<compile_context>
chip_gen: v7x
topology: tpu7x:2x2x1
jax: 0.10.0
libtpu: 0.0.40
codegen_flags: <defaults>
</compile_context>

<pallas_src>
import functools

import jax
import jax.numpy as jnp
from jax.experimental import pallas as pl
from jax.experimental.pallas import tpu as pltpu


def _round_up(v, m):
    return ((v + m - 1) // m) * m


def _pad2(a, rows, cols):
    return jnp.pad(a, ((0, rows - a.shape[0]), (0, cols - a.shape[1])))


def _pick_tile(n_padded):
    # n_padded is a multiple of 128; use the largest tile that divides it so no
    # extra node padding beyond lane alignment is needed.  512-tiles keep the
    # double-buffered working set well under the scoped-VMEM budget on
    # v5e/v6e/v7x alike.
    for t in (512, 256, 128):
        if n_padded % t == 0:
            return t
    return n_padded


# ----------------------------------------------------------------------------
# Fused small-graph path: whole layer stack in one kernel, VMEM-resident.
# ----------------------------------------------------------------------------

_FUSED_VMEM_BUDGET = 12 * 1024 * 1024  # conservative estimate threshold


def _fused_fits(n_pad, c_p, n_layers):
    a_bytes = n_pad * n_pad * (2 + 4)            # bf16 input + f32 cast temp
    act_bytes = 6 * n_pad * c_p * 4              # x, h, hcat(2x), out (+slack)
    w_bytes = n_layers * c_p * (2 * c_p + 1) * 4
    return a_bytes + act_bytes + w_bytes <= _FUSED_VMEM_BUDGET


def _fused_kernel(a_ref, x_ref, w_ref, b_ref, o_ref, *, n_layers, c_p):
    a = a_ref[...].astype(jnp.float32)           # hoisted once (unrolled loop)
    h = x_ref[...]
    for l in range(n_layers):
        hcat = jnp.dot(h, w_ref[l], preferred_element_type=jnp.float32)
        h = (jnp.dot(a, hcat[:, :c_p], preferred_element_type=jnp.float32)
             + hcat[:, c_p:] + b_ref[l])
        if l < n_layers - 1:
            h = jnp.maximum(h, 0.0)
    o_ref[...] = h


def _fused_forward_call(adj_bf16, x_pad, w_stack, b_stack):
    n_pad, c_p = x_pad.shape
    n_layers = w_stack.shape[0]
    kernel = functools.partial(_fused_kernel, n_layers=n_layers, c_p=c_p)
    vmem_spec = pl.BlockSpec(memory_space=pltpu.MemorySpace.VMEM)
    return pl.pallas_call(
        kernel,
        out_shape=jax.ShapeDtypeStruct((n_pad, c_p), jnp.float32),
        in_specs=[vmem_spec, vmem_spec, vmem_spec, vmem_spec],
        out_specs=vmem_spec,
        compiler_params=pltpu.CompilerParams(
            vmem_limit_bytes=48 * 1024 * 1024),
    )(adj_bf16, x_pad, w_stack, b_stack)


def _forward_fused(layers, x, adj, n_pad, c_p):
    adj_p = _pad2(adj, n_pad, n_pad).astype(jnp.bfloat16)
    x_p = _pad2(x.astype(jnp.float32), n_pad, c_p)
    w_stack = jnp.stack([
        jnp.concatenate([_pad2(p["w_rel"], c_p, c_p),
                         _pad2(p["w_root"], c_p, c_p)], axis=1)
        for p in layers])
    b_stack = jnp.stack([_pad2(p["b"], 1, c_p) for p in layers])
    return _fused_forward_call(adj_p, x_p, w_stack, b_stack)


# ----------------------------------------------------------------------------
# Tiled large-graph path: transform kernel + aggregation kernel per layer.
# ----------------------------------------------------------------------------

def _transform_kernel(x_ref, wcat_ref, b_ref, hrel_ref, rb_ref, *, c_out_p):
    # One MXU pass on concat([W_rel, W_root]); done once per layer (no
    # per-row-tile recomputation in the aggregation kernel).
    h = jnp.dot(x_ref[...], wcat_ref[...], preferred_element_type=jnp.float32)
    hrel_ref[...] = h[:, :c_out_p]
    rb_ref[...] = h[:, c_out_p:] + b_ref[...]


def _transform(x_pad, w_cat, b_pad, *, tile):
    n_pad, c_in_p = x_pad.shape
    c_out_p = b_pad.shape[1]
    kernel = functools.partial(_transform_kernel, c_out_p=c_out_p)
    return pl.pallas_call(
        kernel,
        out_shape=(jax.ShapeDtypeStruct((n_pad, c_out_p), jnp.float32),
                   jax.ShapeDtypeStruct((n_pad, c_out_p), jnp.float32)),
        grid_spec=pltpu.PrefetchScalarGridSpec(
            num_scalar_prefetch=0,
            grid=(n_pad // tile,),
            in_specs=[
                pl.BlockSpec((tile, c_in_p), lambda i: (i, 0)),       # x tile
                pl.BlockSpec((c_in_p, 2 * c_out_p), lambda i: (0, 0)),  # W_cat
                pl.BlockSpec((1, c_out_p), lambda i: (0, 0)),         # bias
            ],
            out_specs=[
                pl.BlockSpec((tile, c_out_p), lambda i: (i, 0)),      # H_rel
                pl.BlockSpec((tile, c_out_p), lambda i: (i, 0)),      # RB
            ],
        ),
        compiler_params=pltpu.CompilerParams(
            dimension_semantics=("parallel",)),
    )(x_pad, w_cat, b_pad)


def _aggregate_kernel(a_ref, hrel_ref, rb_ref, o_ref, *, apply_relu):
    k = pl.program_id(1)

    @pl.when(k == 0)
    def _():
        # Fold root term + bias into accumulator init.
        o_ref[...] = rb_ref[...]

    o_ref[...] += jnp.dot(a_ref[...].astype(jnp.float32), hrel_ref[...],
                          preferred_element_type=jnp.float32)

    if apply_relu:
        @pl.when(k == pl.num_programs(1) - 1)
        def _():
            o_ref[...] = jnp.maximum(o_ref[...], 0.0)


def _aggregate(adj_bf16, h_rel, rb, *, apply_relu, tile):
    n_pad = adj_bf16.shape[0]
    c_out_p = h_rel.shape[1]
    kernel = functools.partial(_aggregate_kernel, apply_relu=apply_relu)
    return pl.pallas_call(
        kernel,
        out_shape=jax.ShapeDtypeStruct((n_pad, c_out_p), jnp.float32),
        grid_spec=pltpu.PrefetchScalarGridSpec(
            num_scalar_prefetch=0,
            grid=(n_pad // tile, n_pad // tile),
            in_specs=[
                pl.BlockSpec((tile, tile), lambda i, k: (i, k)),       # A
                pl.BlockSpec((tile, c_out_p), lambda i, k: (k, 0)),    # H_rel
                pl.BlockSpec((tile, c_out_p), lambda i, k: (i, 0)),    # RB
            ],
            out_specs=pl.BlockSpec((tile, c_out_p), lambda i, k: (i, 0)),
        ),
        compiler_params=pltpu.CompilerParams(
            dimension_semantics=("parallel", "arbitrary")),
    )(adj_bf16, h_rel, rb)


def _forward_tiled(layers, x, adj, n_pad):
    tile = _pick_tile(n_pad)
    adj_p = _pad2(adj, n_pad, n_pad).astype(jnp.bfloat16)
    c_in = x.shape[1]
    h = _pad2(x.astype(jnp.float32), n_pad, _round_up(c_in, 128))
    for li, p in enumerate(layers):
        is_last = li == len(layers) - 1
        w_rel, w_root, b = p["w_rel"], p["w_root"], p["b"]
        ci, co = w_rel.shape
        ci_p, co_p = _round_up(ci, 128), _round_up(co, 128)
        w_cat = jnp.concatenate(
            [_pad2(w_rel, ci_p, co_p), _pad2(w_root, ci_p, co_p)], axis=1)
        b_p = _pad2(b, 1, co_p)
        h_rel, rb = _transform(h, w_cat, b_p, tile=tile)
        h = _aggregate(adj_p, h_rel, rb, apply_relu=not is_last, tile=tile)
    return h


# ----------------------------------------------------------------------------
# Model wrapper
# ----------------------------------------------------------------------------

def init_graph_conv_params(key, c_in, c_out):
    """Deterministic init mimicking torch Linear default U[-1/sqrt(fan_in), .]."""
    k1, k2, k3 = jax.random.split(key, 3)
    bound = 1.0 / float(c_in) ** 0.5
    w_rel = jax.random.uniform(k1, (c_in, c_out), jnp.float32, -bound, bound)
    w_root = jax.random.uniform(k2, (c_in, c_out), jnp.float32, -bound, bound)
    b = jax.random.uniform(k3, (1, c_out), jnp.float32, -bound, bound)
    return {"w_rel": w_rel, "w_root": w_root, "b": b}


def init_basic_gnn_params(key, in_channels, hidden_channels, out_channels):
    dims = [in_channels] + list(hidden_channels)
    keys = jax.random.split(key, len(hidden_channels) + 1)
    conv_params = [
        init_graph_conv_params(keys[i], dims[i], dims[i + 1])
        for i in range(len(hidden_channels))
    ]
    final_params = init_graph_conv_params(keys[-1], hidden_channels[-1],
                                          out_channels)
    return conv_params, final_params


def edge_index_to_adj(edge_index, num_nodes):
    src, dst = edge_index[0], edge_index[1]
    a = jnp.zeros((num_nodes, num_nodes), jnp.float32)
    return a.at[dst, src].add(1.0)


def basic_gnn_forward(conv_params, final_params, x, adj, *, force_tiled=False):
    """basicGNN.forward with mlp=False, pooling=False, eval mode."""
    layers = list(conv_params) + [final_params]
    n, c_in = x.shape
    out_c = layers[-1]["w_rel"].shape[1]
    n_pad = _round_up(n, 128)

    dims = [c_in] + [p["w_rel"].shape[1] for p in layers]
    c_max_p = _round_up(max(dims), 128)

    # TODO(synk): F.dropout(p=0.5) is identity in eval mode; training-mode
    # stochastic dropout not implemented here.
    if (not force_tiled) and _fused_fits(n_pad, c_max_p, len(layers)):
        h = _forward_fused(layers, x, adj, n_pad, c_max_p)
    else:
        h = _forward_tiled(layers, x, adj, n_pad)
    return h[:n, :out_c]


def _reference_forward(conv_params, final_params, x, adj):
    """Pure-JAX reference matching PyG GraphConv semantics (for validation)."""
    h = x
    for p in conv_params:
        h = (adj @ h) @ p["w_rel"] + p["b"] + h @ p["w_root"]
        h = jnp.maximum(h, 0.0)
    p = final_params
    return (adj @ h) @ p["w_rel"] + p["b"] + h @ p["w_root"]


def _check(out, ref, name, tol=1e-3):
    err = float(jnp.max(jnp.abs(out - ref)))
    scale = max(1.0, float(jnp.max(jnp.abs(ref))))
    assert err / scale < tol, f"{name}: max|err|={err}, scale={scale}"


if __name__ == "__main__":
    key = jax.random.PRNGKey(0)
    k_param, k_x, k_e, k_x2 = jax.random.split(key, 4)

    in_channels = 8
    hidden_channels = [32, 32]
    out_channels = 4

    conv_params, final_params = init_basic_gnn_params(
        k_param, in_channels, hidden_channels, out_channels)

    # ---- small graph (16 nodes): fused single-kernel path -------------------
    num_nodes = 16
    x = jax.random.normal(k_x, (num_nodes, in_channels), jnp.float32)
    src = list(range(num_nodes)) + list(range(num_nodes)) + [0, 8, 3, 11]
    dst = ([(i + 1) % num_nodes for i in range(num_nodes)]
           + [(i - 1) % num_nodes for i in range(num_nodes)]
           + [8, 0, 11, 3])
    edge_index = jnp.array([src, dst], dtype=jnp.int32)
    adj = edge_index_to_adj(edge_index, num_nodes)
    ref = _reference_forward(conv_params, final_params, x, adj)

    out_fused = basic_gnn_forward(conv_params, final_params, x, adj)
    jax.block_until_ready(out_fused)
    assert out_fused.shape == (num_nodes, out_channels)
    _check(out_fused, ref, "fused small-graph")

    out_tiled = basic_gnn_forward(conv_params, final_params, x, adj,
                                  force_tiled=True)
    jax.block_until_ready(out_tiled)
    _check(out_tiled, ref, "tiled small-graph")

    # ---- 300-node graph: exercises multi-tile k-reduction in the tiled path -
    num_nodes2 = 300
    x2 = jax.random.normal(k_x2, (num_nodes2, in_channels), jnp.float32)
    edge_index2 = jax.random.randint(k_e, (2, 1200), 0, num_nodes2,
                                     dtype=jnp.int32)
    adj2 = edge_index_to_adj(edge_index2, num_nodes2)
    ref2 = _reference_forward(conv_params, final_params, x2, adj2)

    out2 = basic_gnn_forward(conv_params, final_params, x2, adj2,
                             force_tiled=True)
    jax.block_until_ready(out2)
    assert out2.shape == (num_nodes2, out_channels)
    _check(out2, ref2, "tiled 300-node")

    print("KERNEL_OK")
</pallas_src>

<mosaic_0001>
module attributes {stable_mosaic.version = 11 : i64} {
  func.func @_fused_kernel(%arg0: memref<128x128xbf16, #tpu.memory_space<vmem>>, %arg1: memref<128x128xf32, #tpu.memory_space<vmem>>, %arg2: memref<3x128x256xf32, #tpu.memory_space<vmem>>, %arg3: memref<3x1x128xf32, #tpu.memory_space<vmem>>, %arg4: memref<128x128xf32, #tpu.memory_space<vmem>>) attributes {dimension_semantics = [], scalar_prefetch = 0 : i64, scratch_operands = 0 : i64, tpu.core_type = #tpu.core_type<tc>} {
    %c0 = arith.constant 0 : index
    %c0_0 = arith.constant 0 : index
    %0 = vector.load %arg0[%c0, %c0_0] : memref<128x128xbf16, #tpu.memory_space<vmem>>, vector<128x128xbf16>
    %1 = arith.extf %0 : vector<128x128xbf16> to vector<128x128xf32>
    %c0_1 = arith.constant 0 : index
    %c0_2 = arith.constant 0 : index
    %2 = vector.load %arg1[%c0_1, %c0_2] : memref<128x128xf32, #tpu.memory_space<vmem>>, vector<128x128xf32>
    %c0_3 = arith.constant 0 : index
    %c0_4 = arith.constant 0 : index
    %c0_5 = arith.constant 0 : index
    %3 = vector.load %arg2[%c0_3, %c0_4, %c0_5] : memref<3x128x256xf32, #tpu.memory_space<vmem>>, vector<1x128x256xf32>
    %4 = vector.shape_cast %3 : vector<1x128x256xf32> to vector<128x256xf32>
    %cst = arith.constant dense<0.000000e+00> : vector<128x256xf32>
    %5 = tpu.matmul %2, %4, %cst {dimension_numbers = #tpu.dot_dimension_numbers<[1], [0], [0], [1], [0, 0, 1, 1], [], []>} : vector<128x128xf32>, vector<128x256xf32>, vector<128x256xf32> -> vector<128x256xf32>
    %6 = vector.extract_strided_slice %5 {offsets = [0, 0], sizes = [128, 128], strides = [1, 1]} : vector<128x256xf32> to vector<128x128xf32>
    %cst_6 = arith.constant dense<0.000000e+00> : vector<128x128xf32>
    %7 = tpu.matmul %1, %6, %cst_6 {dimension_numbers = #tpu.dot_dimension_numbers<[1], [0], [0], [1], [0, 0, 1, 1], [], []>} : vector<128x128xf32>, vector<128x128xf32>, vector<128x128xf32> -> vector<128x128xf32>
    %8 = vector.extract_strided_slice %5 {offsets = [0, 128], sizes = [128, 128], strides = [1, 1]} : vector<128x256xf32> to vector<128x128xf32>
    %9 = arith.addf %7, %8 : vector<128x128xf32>
    %c0_7 = arith.constant 0 : index
    %c0_8 = arith.constant 0 : index
    %c0_9 = arith.constant 0 : index
    %10 = vector.load %arg3[%c0_7, %c0_8, %c0_9] : memref<3x1x128xf32, #tpu.memory_space<vmem>>, vector<1x1x128xf32>
    %11 = vector.shape_cast %10 : vector<1x1x128xf32> to vector<1x128xf32>
    %12 = vector.broadcast %11 : vector<1x128xf32> to vector<128x128xf32>
    %13 = arith.addf %9, %12 : vector<128x128xf32>
    %cst_10 = arith.constant 0.000000e+00 : f32
    %14 = vector.broadcast %cst_10 : f32 to vector<128x128xf32>
    %15 = arith.maximumf %13, %14 : vector<128x128xf32>
    %c1 = arith.constant 1 : index
    %c0_11 = arith.constant 0 : index
    %c0_12 = arith.constant 0 : index
    %16 = vector.load %arg2[%c1, %c0_11, %c0_12] : memref<3x128x256xf32, #tpu.memory_space<vmem>>, vector<1x128x256xf32>
    %17 = vector.shape_cast %16 : vector<1x128x256xf32> to vector<128x256xf32>
    %cst_13 = arith.constant dense<0.000000e+00> : vector<128x256xf32>
    %18 = tpu.matmul %15, %17, %cst_13 {dimension_numbers = #tpu.dot_dimension_numbers<[1], [0], [0], [1], [0, 0, 1, 1], [], []>} : vector<128x128xf32>, vector<128x256xf32>, vector<128x256xf32> -> vector<128x256xf32>
    %19 = vector.extract_strided_slice %18 {offsets = [0, 0], sizes = [128, 128], strides = [1, 1]} : vector<128x256xf32> to vector<128x128xf32>
    %cst_14 = arith.constant dense<0.000000e+00> : vector<128x128xf32>
    %20 = tpu.matmul %1, %19, %cst_14 {dimension_numbers = #tpu.dot_dimension_numbers<[1], [0], [0], [1], [0, 0, 1, 1], [], []>} : vector<128x128xf32>, vector<128x128xf32>, vector<128x128xf32> -> vector<128x128xf32>
    %21 = vector.extract_strided_slice %18 {offsets = [0, 128], sizes = [128, 128], strides = [1, 1]} : vector<128x256xf32> to vector<128x128xf32>
    %22 = arith.addf %20, %21 : vector<128x128xf32>
    %c1_15 = arith.constant 1 : index
    %c0_16 = arith.constant 0 : index
    %c0_17 = arith.constant 0 : index
    %23 = vector.load %arg3[%c1_15, %c0_16, %c0_17] : memref<3x1x128xf32, #tpu.memory_space<vmem>>, vector<1x1x128xf32>
    %24 = vector.shape_cast %23 : vector<1x1x128xf32> to vector<1x128xf32>
    %25 = vector.broadcast %24 : vector<1x128xf32> to vector<128x128xf32>
    %26 = arith.addf %22, %25 : vector<128x128xf32>
    %cst_18 = arith.constant 0.000000e+00 : f32
    %27 = vector.broadcast %cst_18 : f32 to vector<128x128xf32>
    %28 = arith.maximumf %26, %27 : vector<128x128xf32>
    %c2 = arith.constant 2 : index
    %c0_19 = arith.constant 0 : index
    %c0_20 = arith.constant 0 : index
    %29 = vector.load %arg2[%c2, %c0_19, %c0_20] : memref<3x128x256xf32, #tpu.memory_space<vmem>>, vector<1x128x256xf32>
    %30 = vector.shape_cast %29 : vector<1x128x256xf32> to vector<128x256xf32>
    %cst_21 = arith.constant dense<0.000000e+00> : vector<128x256xf32>
    %31 = tpu.matmul %28, %30, %cst_21 {dimension_numbers = #tpu.dot_dimension_numbers<[1], [0], [0], [1], [0, 0, 1, 1], [], []>} : vector<128x128xf32>, vector<128x256xf32>, vector<128x256xf32> -> vector<128x256xf32>
    %32 = vector.extract_strided_slice %31 {offsets = [0, 0], sizes = [128, 128], strides = [1, 1]} : vector<128x256xf32> to vector<128x128xf32>
    %cst_22 = arith.constant dense<0.000000e+00> : vector<128x128xf32>
    %33 = tpu.matmul %1, %32, %cst_22 {dimension_numbers = #tpu.dot_dimension_numbers<[1], [0], [0], [1], [0, 0, 1, 1], [], []>} : vector<128x128xf32>, vector<128x128xf32>, vector<128x128xf32> -> vector<128x128xf32>
    %34 = vector.extract_strided_slice %31 {offsets = [0, 128], sizes = [128, 128], strides = [1, 1]} : vector<128x256xf32> to vector<128x128xf32>
    %35 = arith.addf %33, %34 : vector<128x128xf32>
    %c2_23 = arith.constant 2 : index
    %c0_24 = arith.constant 0 : index
    %c0_25 = arith.constant 0 : index
    %36 = vector.load %arg3[%c2_23, %c0_24, %c0_25] : memref<3x1x128xf32, #tpu.memory_space<vmem>>, vector<1x1x128xf32>
    %37 = vector.shape_cast %36 : vector<1x1x128xf32> to vector<1x128xf32>
    %38 = vector.broadcast %37 : vector<1x128xf32> to vector<128x128xf32>
    %39 = arith.addf %35, %38 : vector<128x128xf32>
    %c0_26 = arith.constant 0 : index
    %c0_27 = arith.constant 0 : index
    %40 = vector.load %arg4[%c0_26, %c0_27] : memref<128x128xf32, #tpu.memory_space<vmem>>, vector<128x128xf32>
    tpu.vector_store %arg4[%c0_26, %c0_27], %39 {strides = array<i32>} : memref<128x128xf32, #tpu.memory_space<vmem>>, vector<128x128xf32>,
    return
  }
}

</mosaic_0001>

<llo_original>
// kernel: tpu_custom_call.1
$region0: #{tpu_custom_call.1}
  #allocation0 [shape = 'u32[]', space=smem, size = 0x4, offset = 0x4, fixed_abs, tag = 'smem constant byte address 0x4 - core index']
  #allocation1 [shape = 'u32[144,128]{1,0:T(1,128)}', space=vmem, size = 0x12000, scoped, tag = 'internal scratch']
  %s0 = inlined_call_operand.hbm [shape: bf16[128,128], index: 0, kind: input, shape index: {}]
  %s1 = inlined_call_operand.hbm [shape: f32[128,128], index: 1, kind: input, shape index: {}]
  %s2 = inlined_call_operand.hbm [shape: f32[3,128,256], index: 2, kind: input, shape index: {}]
  %s3 = inlined_call_operand.vmem [shape: f32[3,1,128], index: 3, kind: input, shape index: {}]
  %s4 = inlined_call_operand.hbm [shape: f32[128,128], index: 4, kind: output, shape index: {}]
  %s5 = sld [smem:[#allocation0]]
  $region38: #{tpu_custom_call.1} parent=0
    _
  %s7 = ssub.s32 1, %s5
  %s8 = scalar_select 0, %s7, %s5
  $region1: #{tpu_custom_call.1} parent=0
    #allocation2 [shape = 'u8[32768]{0}', space=vmem, size = 0x8000, scoped, tag = 'input window, operand 0, single buffered']
    #allocation3 [shape = 's32[1]{0}', space=sflag, size = 0x4, scoped, tag = 'scoped memory for tpu_custom_call.1']
    #allocation4 [shape = 's32[1]{0}', space=sflag, size = 0x4, scoped, tag = 'scoped memory for tpu_custom_call.1']
    #allocation5 [shape = 'u8[65536]{0}', space=vmem, size = 0x10000, scoped, tag = 'input window, operand 1, single buffered']
    #allocation6 [shape = 's32[1]{0}', space=sflag, size = 0x4, scoped, tag = 'scoped memory for tpu_custom_call.1']
    #allocation7 [shape = 'u8[393216]{0}', space=vmem, size = 0x60000, scoped, tag = 'input window, operand 2, single buffered']
    #allocation8 [shape = 'u8[65536]{0}', space=vmem, size = 0x10000, scoped, tag = 'output window, operand 0, single buffered']
    %9 = vsyncpa [#allocation3], 0
    %10 = vsyncpa [#allocation6], 0
    %11 = vsyncpa [#allocation4], 0
    // Predicated region
    $region2: #{tpu_custom_call.1} parent=1 // pred_check
      _
    $region3: #{tpu_custom_call.1} parent=1 // pred_check_branch
      %13 = sbr.rel (0) target = $region5
    $region4: #{tpu_custom_call.1} parent=1 // pred_region
      %s15 = ssub.s32 1024, 1024
      %16 = vsyncadd [#allocation3], %s15
      %s17 = sshll.u32 [#allocation2], 4
      %s18 = int_to_ptr.vmem [resolvable:$true] %s17
      %23 = dma.hbm_to_vmem [thread:$0]  %s0, 1024, %s18, [#allocation3], 64, 64, 4
    $region5: #{tpu_custom_call.1} parent=1 // pred_fallthru
      _
    // Predicated region
    $region6: #{tpu_custom_call.1} parent=1 // pred_check
      _
    $region7: #{tpu_custom_call.1} parent=1 // pred_check_branch
      %25 = sbr.rel (0) target = $region9
    $region8: #{tpu_custom_call.1} parent=1 // pred_region
      %s27 = ssub.s32 2048, 2048
      %28 = vsyncadd [#allocation6], %s27
      %s29 = sshll.u32 [#allocation5], 4
      %s30 = int_to_ptr.vmem [resolvable:$true] %s29
      %35 = dma.hbm_to_vmem [thread:$0]  %s1, 2048, %s30, [#allocation6], 128, 128, 8
    $region9: #{tpu_custom_call.1} parent=1 // pred_fallthru
      _
    // Predicated region
    $region10: #{tpu_custom_call.1} parent=1 // pred_check
      _
    $region11: #{tpu_custom_call.1} parent=1 // pred_check_branch
      %37 = sbr.rel (0) target = $region13
    $region12: #{tpu_custom_call.1} parent=1 // pred_region
      %s39 = ssub.s32 12288, 12288
      %40 = vsyncadd [#allocation6], %s39
      %s41 = sshll.u32 [#allocation7], 4
      %s42 = int_to_ptr.vmem [resolvable:$true] %s41
      %47 = dma.hbm_to_vmem [thread:$0]  %s2, 12288, %s42, [#allocation6], 256, 256, 16
    $region13: #{tpu_custom_call.1} parent=1 // pred_fallthru
      _
    // Predicated region
    $region14: #{tpu_custom_call.1} parent=1 // pred_check
      _
    $region15: #{tpu_custom_call.1} parent=1 // pred_check_branch
      %49 = sbr.rel (0) target = $region17
    $region16: #{tpu_custom_call.1} parent=1 // pred_region
      _
    $region17: #{tpu_custom_call.1} parent=1 // pred_fallthru
      _
    // Predicated region
    $region18: #{tpu_custom_call.1} parent=1 // pred_check
      _
    $region19: #{tpu_custom_call.1} parent=1 // pred_check_branch
      %51 = sbr.rel (0) target = $region21
    $region20: #{tpu_custom_call.1} parent=1 // pred_region
      %52 = dma.done [#allocation3], 1024
    $region21: #{tpu_custom_call.1} parent=1 // pred_fallthru
      _
    // Predicated region
    $region22: #{tpu_custom_call.1} parent=1 // pred_check
      _
    $region23: #{tpu_custom_call.1} parent=1 // pred_check_branch
      %54 = sbr.rel (0) target = $region25
    $region24: #{tpu_custom_call.1} parent=1 // pred_region
      %55 = dma.done [#allocation6], 2048
    $region25: #{tpu_custom_call.1} parent=1 // pred_fallthru
      _
    // Predicated region
    $region26: #{tpu_custom_call.1} parent=1 // pred_check
      _
    $region27: #{tpu_custom_call.1} parent=1 // pred_check_branch
      %57 = sbr.rel (0) target = $region29
    $region28: #{tpu_custom_call.1} parent=1 // pred_region
      %58 = dma.done [#allocation6], 12288
    $region29: #{tpu_custom_call.1} parent=1 // pred_fallthru
      _
    %v59 = vld [vmem:[#allocation2] sm:$0xf]
    %v60 = vld [vmem:[#allocation2 + $0x4] sm:$0xf]
    %v61 = vld [vmem:[#allocation2 + $0x8] sm:$0xf]
    %v62 = vld [vmem:[#allocation2 + $0xc] sm:$0xf]
    %v63 = vld [vmem:[#allocation2 + $0x10] sm:$0xf]
    %v64 = vld [vmem:[#allocation2 + $0x14] sm:$0xf]
    %v65 = vld [vmem:[#allocation2 + $0x18] sm:$0xf]
    %v66 = vld [vmem:[#allocation2 + $0x1c] sm:$0xf]
    %v67 = vld [vmem:[#allocation2 + $0x20] sm:$0xf]
    %v68 = vld [vmem:[#allocation2 + $0x24] sm:$0xf]
    %v69 = vld [vmem:[#allocation2 + $0x28] sm:$0xf]
    %v70 = vld [vmem:[#allocation2 + $0x2c] sm:$0xf]
    %v71 = vld [vmem:[#allocation2 + $0x30] sm:$0xf]
    %v72 = vld [vmem:[#allocation2 + $0x34] sm:$0xf]
    %v73 = vld [vmem:[#allocation2 + $0x38] sm:$0xf]
    %v74 = vld [vmem:[#allocation2 + $0x3c] sm:$0xf]
    %v75 = vunpack.c.l.bf16 %v59
    %v76 = vunpack.c.l.bf16 %v60
    %v77 = vunpack.c.l.bf16 %v61
    %v78 = vunpack.c.l.bf16 %v62
    %v79 = vunpack.c.l.bf16 %v63
    %v80 = vunpack.c.l.bf16 %v64
    %v81 = vunpack.c.l.bf16 %v65
    %v82 = vunpack.c.l.bf16 %v66
    %v83 = vunpack.c.l.bf16 %v67
    %v84 = vunpack.c.l.bf16 %v68
    %v85 = vunpack.c.l.bf16 %v69
    %v86 = vunpack.c.l.bf16 %v70
    %v87 = vunpack.c.l.bf16 %v71
    %v88 = vunpack.c.l.bf16 %v72
    %v89 = vunpack.c.l.bf16 %v73
    %v90 = vunpack.c.l.bf16 %v74
    %v91 = vld [vmem:[#allocation5] sm:$0xff]
    %v92 = vld [vmem:[#allocation5 + $0x8] sm:$0xff]
    %v93 = vld [vmem:[#allocation5 + $0x10] sm:$0xff]
    %v94 = vld [vmem:[#allocation5 + $0x18] sm:$0xff]
    %v95 = vld [vmem:[#allocation5 + $0x20] sm:$0xff]
    %v96 = vld [vmem:[#allocation5 + $0x28] sm:$0xff]
    %v97 = vld [vmem:[#allocation5 + $0x30] sm:$0xff]
    %v98 = vld [vmem:[#allocation5 + $0x38] sm:$0xff]
    %v99 = vld [vmem:[#allocation5 + $0x40] sm:$0xff]
    %v100 = vld [vmem:[#allocation5 + $0x48] sm:$0xff]
    %v101 = vld [vmem:[#allocation5 + $0x50] sm:$0xff]
    %v102 = vld [vmem:[#allocation5 + $0x58] sm:$0xff]
    %v103 = vld [vmem:[#allocation5 + $0x60] sm:$0xff]
    %v104 = vld [vmem:[#allocation5 + $0x68] sm:$0xff]
    %v105 = vld [vmem:[#allocation5 + $0x70] sm:$0xff]
    %v106 = vld [vmem:[#allocation5 + $0x78] sm:$0xff]
    %v107 = vld [vmem:[#allocation7] sm:$0xff]
    %v108 = vld [vmem:[#allocation7 + $0x8] sm:$0xff]
    %v109 = vld [vmem:[#allocation7 + $0x10] sm:$0xff]
    %v110 = vld [vmem:[#allocation7 + $0x18] sm:$0xff]
    %v111 = vld [vmem:[#allocation7 + $0x20] sm:$0xff]
    %v112 = vld [vmem:[#allocation7 + $0x28] sm:$0xff]
    %v113 = vld [vmem:[#allocation7 + $0x30] sm:$0xff]
    %v114 = vld [vmem:[#allocation7 + $0x38] sm:$0xff]
    %v115 = vld [vmem:[#allocation7 + $0x40] sm:$0xff]
    %v116 = vld [vmem:[#allocation7 + $0x48] sm:$0xff]
    %v117 = vld [vmem:[#allocation7 + $0x50] sm:$0xff]
    %v118 = vld [vmem:[#allocation7 + $0x58] sm:$0xff]
    %v119 = vld [vmem:[#allocation7 + $0x60] sm:$0xff]
    %v120 = vld [vmem:[#allocation7 + $0x68] sm:$0xff]
    %v121 = vld [vmem:[#allocation7 + $0x70] sm:$0xff]
    %v122 = vld [vmem:[#allocation7 + $0x78] sm:$0xff]
    %v123 = vld [vmem:[#allocation7 + $0x80] sm:$0xff]
    %v124 = vld [vmem:[#allocation7 + $0x88] sm:$0xff]
    %v125 = vld [vmem:[#allocation7 + $0x90] sm:$0xff]
    %v126 = vld [vmem:[#allocation7 + $0x98] sm:$0xff]
    %v127 = vld [vmem:[#allocation7 + $0xa0] sm:$0xff]
    %v128 = vld [vmem:[#allocation7 + $0xa8] sm:$0xff]
    %v129 = vld [vmem:[#allocation7 + $0xb0] sm:$0xff]
    %v130 = vld [vmem:[#allocation7 + $0xb8] sm:$0xff]
    %v131 = vld [vmem:[#allocation7 + $0xc0] sm:$0xff]
    %v132 = vld [vmem:[#allocation7 + $0xc8] sm:$0xff]
    %v133 = vld [vmem:[#allocation7 + $0xd0] sm:$0xff]
    %v134 = vld [vmem:[#allocation7 + $0xd8] sm:$0xff]
    %v135 = vld [vmem:[#allocation7 + $0xe0] sm:$0xff]
    %v136 = vld [vmem:[#allocation7 + $0xe8] sm:$0xff]
    %v137 = vld [vmem:[#allocation7 + $0xf0] sm:$0xff]
    %v138 = vld [vmem:[#allocation7 + $0xf8] sm:$0xff]
    %139 = vmatprep.subr.mxu0 %v108
    %140 = vmatpush1.msra.mxu0 %v107
    %141 = vmatprep.subr.mxu0 %v110
    %142 = vmatpush1.msra.mxu0 %v109
    %143 = vmatprep.subr.mxu0 %v112
    %144 = vmatpush1.msra.mxu0 %v111
    %145 = vmatprep.subr.mxu0 %v114
    %146 = vmatpush1.msra.mxu0 %v113
    %147 = vmatprep.subr.mxu0 %v116
    %148 = vmatpush1.msra.mxu0 %v115
    %149 = vmatprep.subr.mxu0 %v118
    %150 = vmatpush1.msra.mxu0 %v117
    %151 = vmatprep.subr.mxu0 %v120
    %152 = vmatpush1.msra.mxu0 %v119
    %153 = vmatprep.subr.mxu0 %v122
    %154 = vmatpush1.msra.mxu0 %v121
    %155 = vmatprep.subr.mxu0 %v124
    %156 = vmatpush1.msra.mxu0 %v123
    %157 = vmatprep.subr.mxu0 %v126
    %158 = vmatpush1.msra.mxu0 %v125
    %159 = vmatprep.subr.mxu0 %v128
    %160 = vmatpush1.msra.mxu0 %v127
    %161 = vmatprep.subr.mxu0 %v130
    %162 = vmatpush1.msra.mxu0 %v129
    %163 = vmatprep.subr.mxu0 %v132
    %164 = vmatpush1.msra.mxu0 %v131
    %165 = vmatprep.subr.mxu0 %v134
    %166 = vmatpush1.msra.mxu0 %v133
    %167 = vmatprep.subr.mxu0 %v136
    %168 = vmatpush1.msra.mxu0 %v135
    %169 = vmatprep.subr.mxu0 %v138
    %170 = vmatpush1.msra.mxu0 %v137
    %171 = vmatprep.subr.mxu0 0.0
    %172 = vmatpush1.msra.mxu0 0.0
    %173 = vmatprep.subr.mxu0 0.0
    %174 = vmatpush1.msra.mxu0 0.0
    %175 = vmatprep.subr.mxu0 0.0
    %176 = vmatpush1.msra.mxu0 0.0
    %177 = vmatprep.subr.mxu0 0.0
    %178 = vmatpush1.msra.mxu0 0.0
    %179 = vmatprep.subr.mxu0 0.0
    %180 = vmatpush1.msra.mxu0 0.0
    %181 = vmatprep.subr.mxu0 0.0
    %182 = vmatpush1.msra.mxu0 0.0
    %183 = vmatprep.subr.mxu0 0.0
    %184 = vmatpush1.msra.mxu0 0.0
    %185 = vmatprep.subr.mxu0 0.0
    %186 = vmatpush1.msra.mxu0 0.0
    %187 = vmatprep.subr.mxu0 0.0
    %188 = vmatpush1.msra.mxu0 0.0
    %189 = vmatprep.subr.mxu0 0.0
    %190 = vmatpush1.msra.mxu0 0.0
    %191 = vmatprep.subr.mxu0 0.0
    %192 = vmatpush1.msra.mxu0 0.0
    %193 = vmatprep.subr.mxu0 0.0
    %194 = vmatpush1.msra.mxu0 0.0
    %195 = vmatprep.subr.mxu0 0.0
    %196 = vmatpush1.msra.mxu0 0.0
    %197 = vmatprep.subr.mxu0 0.0
    %198 = vmatpush1.msra.mxu0 0.0
    %199 = vmatprep.subr.mxu0 0.0
    %200 = vmatpush1.msra.mxu0 0.0
    %201 = vmatprep.subr.mxu0 0.0
    %202 = vmatpush1.msra.mxu0 0.0
    %203 = vmatprep.mubr.f32.mxu0 0.0
    %204 = vmatmul.mubr.f32.gmra.mrb[0].mxu0 %v91
    %v205 = vpop.f32.mrb[0].mxu0
    %v206 = vadd.f32 0.0, %v205
    %v207 = vpop.f32.mrb[0].mxu0
    %v208 = vadd.f32 0.0, %v207
    %209 = vmatprep.mubr.f32.mxu0 0.0
    %210 = vmatmul.mubr.f32.gmra.mrb[0].mxu0 %v92
    %v211 = vpop.f32.mrb[0].mxu0
    %v212 = vadd.f32 0.0, %v211
    %v213 = vpop.f32.mrb[0].mxu0
    %v214 = vadd.f32 0.0, %v213
    %215 = vmatprep.mubr.f32.mxu0 0.0
    %216 = vmatmul.mubr.f32.gmra.mrb[0].mxu0 %v93
    %v217 = vpop.f32.mrb[0].mxu0
    %v218 = vadd.f32 0.0, %v217
    %v219 = vpop.f32.mrb[0].mxu0
    %v220 = vadd.f32 0.0, %v219
    %221 = vmatprep.mubr.f32.mxu0 0.0
    %222 = vmatmul.mubr.f32.gmra.mrb[0].mxu0 %v94
    %v223 = vpop.f32.mrb[0].mxu0
    %v224 = vadd.f32 0.0, %v223
    %v225 = vpop.f32.mrb[0].mxu0
    %v226 = vadd.f32 0.0, %v225
    %227 = vmatprep.mubr.f32.mxu0 0.0
    %228 = vmatmul.mubr.f32.gmra.mrb[0].mxu0 %v95
    %v229 = vpop.f32.mrb[0].mxu0
    %v230 = vadd.f32 0.0, %v229
    %v231 = vpop.f32.mrb[0].mxu0
    %v232 = vadd.f32 0.0, %v231
    %233 = vmatprep.mubr.f32.mxu0 0.0
    %234 = vmatmul.mubr.f32.gmra.mrb[0].mxu0 %v96
    %v235 = vpop.f32.mrb[0].mxu0
    %v236 = vadd.f32 0.0, %v235
    %v237 = vpop.f32.mrb[0].mxu0
    %v238 = vadd.f32 0.0, %v237
    %239 = vmatprep.mubr.f32.mxu0 0.0
    %240 = vmatmul.mubr.f32.gmra.mrb[0].mxu0 %v97
    %v241 = vpop.f32.mrb[0].mxu0
    %v242 = vadd.f32 0.0, %v241
    %v243 = vpop.f32.mrb[0].mxu0
    %v244 = vadd.f32 0.0, %v243
    %245 = vmatprep.mubr.f32.mxu0 0.0
    %246 = vmatmul.mubr.f32.gmra.mrb[0].mxu0 %v98
    %v247 = vpop.f32.mrb[0].mxu0
    %v248 = vadd.f32 0.0, %v247
    %v249 = vpop.f32.mrb[0].mxu0
    %v250 = vadd.f32 0.0, %v249
    %251 = vmatprep.mubr.f32.mxu0 0.0
    %252 = vmatmul.mubr.f32.gmra.mrb[0].mxu0 %v99
    %v253 = vpop.f32.mrb[0].mxu0
    %v254 = vadd.f32 0.0, %v253
    %v255 = vpop.f32.mrb[0].mxu0
    %v256 = vadd.f32 0.0, %v255
    %257 = vmatprep.mubr.f32.mxu0 0.0
    %258 = vmatmul.mubr.f32.gmra.mrb[0].mxu0 %v100
    %v259 = vpop.f32.mrb[0].mxu0
    %v260 = vadd.f32 0.0, %v259
    %v261 = vpop.f32.mrb[0].mxu0
    %v262 = vadd.f32 0.0, %v261
    %263 = vmatprep.mubr.f32.mxu0 0.0
    %264 = vmatmul.mubr.f32.gmra.mrb[0].mxu0 %v101
    %v265 = vpop.f32.mrb[0].mxu0
    %v266 = vadd.f32 0.0, %v265
    %v267 = vpop.f32.mrb[0].mxu0
    %v268 = vadd.f32 0.0, %v267
    %269 = vmatprep.mubr.f32.mxu0 0.0
    %270 = vmatmul.mubr.f32.gmra.mrb[0].mxu0 %v102
    %v271 = vpop.f32.mrb[0].mxu0
    %v272 = vadd.f32 0.0, %v271
    %v273 = vpop.f32.mrb[0].mxu0
    %v274 = vadd.f32 0.0, %v273
    %275 = vmatprep.mubr.f32.mxu0 0.0
    %276 = vmatmul.mubr.f32.gmra.mrb[0].mxu0 %v103
    %v277 = vpop.f32.mrb[0].mxu0
    %v278 = vadd.f32 0.0, %v277
    %v279 = vpop.f32.mrb[0].mxu0
    %v280 = vadd.f32 0.0, %v279
    %281 = vmatprep.mubr.f32.mxu0 0.0
    %282 = vmatmul.mubr.f32.gmra.mrb[0].mxu0 %v104
    %v283 = vpop.f32.mrb[0].mxu0
    %v284 = vadd.f32 0.0, %v283
    %v285 = vpop.f32.mrb[0].mxu0
    %v286 = vadd.f32 0.0, %v285
    %287 = vmatprep.mubr.f32.mxu0 0.0
    %288 = vmatmul.mubr.f32.gmra.mrb[0].mxu0 %v105
    %v289 = vpop.f32.mrb[0].mxu0
    %v290 = vadd.f32 0.0, %v289
    %v291 = vpop.f32.mrb[0].mxu0
    %v292 = vadd.f32 0.0, %v291
    %293 = vmatprep.mubr.f32.mxu0 0.0
    %294 = vmatmul.mubr.f32.gmra.mrb[0].mxu0 %v106
    %v295 = vpop.f32.mrb[0].mxu0
    %v296 = vadd.f32 0.0, %v295
    %v297 = vpop.f32.mrb[0].mxu0
    %v298 = vadd.f32 0.0, %v297
    %299 = vdwg.mxu0
    %300 = vmatprep.subr.mxu0 0.0
    %301 = vmatpush1.msra.mxu0 %v206
    %302 = vmatprep.subr.mxu0 0.0
    %303 = vmatpush1.msra.mxu0 %v212
    %304 = vmatprep.subr.mxu0 0.0
    %305 = vmatpush1.msra.mxu0 %v218
    %306 = vmatprep.subr.mxu0 0.0
    %307 = vmatpush1.msra.mxu0 %v224
    %308 = vmatprep.subr.mxu0 0.0
    %309 = vmatpush1.msra.mxu0 %v230
    %310 = vmatprep.subr.mxu0 0.0
    %311 = vmatpush1.msra.mxu0 %v236
    %312 = vmatprep.subr.mxu0 0.0
    %313 = vmatpush1.msra.mxu0 %v242
    %314 = vmatprep.subr.mxu0 0.0
    %315 = vmatpush1.msra.mxu0 %v248
    %316 = vmatprep.subr.mxu0 0.0
    %317 = vmatpush1.msra.mxu0 %v254
    %318 = vmatprep.subr.mxu0 0.0
    %319 = vmatpush1.msra.mxu0 %v260
    %320 = vmatprep.subr.mxu0 0.0
    %321 = vmatpush1.msra.mxu0 %v266
    %322 = vmatprep.subr.mxu0 0.0
    %323 = vmatpush1.msra.mxu0 %v272
    %324 = vmatprep.subr.mxu0 0.0
    %325 = vmatpush1.msra.mxu0 %v278
    %326 = vmatprep.subr.mxu0 0.0
    %327 = vmatpush1.msra.mxu0 %v284
    %328 = vmatprep.subr.mxu0 0.0
    %329 = vmatpush1.msra.mxu0 %v290
    %330 = vmatprep.subr.mxu0 0.0
    %331 = vmatpush1.msra.mxu0 %v296
    %332 = vmatprep.subr.mxu0 0.0
    %333 = vmatpush1.msra.mxu0 0.0
    %334 = vmatprep.subr.mxu0 0.0
    %335 = vmatpush1.msra.mxu0 0.0
    %336 = vmatprep.subr.mxu0 0.0
    %337 = vmatpush1.msra.mxu0 0.0
    %338 = vmatprep.subr.mxu0 0.0
    %339 = vmatpush1.msra.mxu0 0.0
    %340 = vmatprep.subr.mxu0 0.0
    %341 = vmatpush1.msra.mxu0 0.0
    %342 = vmatprep.subr.mxu0 0.0
    %343 = vmatpush1.msra.mxu0 0.0
    %344 = vmatprep.subr.mxu0 0.0
    %345 = vmatpush1.msra.mxu0 0.0
    %346 = vmatprep.subr.mxu0 0.0
    %347 = vmatpush1.msra.mxu0 0.0
    %348 = vmatprep.subr.mxu0 0.0
    %349 = vmatpush1.msra.mxu0 0.0
    %350 = vmatprep.subr.mxu0 0.0
    %351 = vmatpush1.msra.mxu0 0.0
    %352 = vmatprep.subr.mxu0 0.0
    %353 = vmatpush1.msra.mxu0 0.0
    %354 = vmatprep.subr.mxu0 0.0
    %355 = vmatpush1.msra.mxu0 0.0
    %356 = vmatprep.subr.mxu0 0.0
    %357 = vmatpush1.msra.mxu0 0.0
    %358 = vmatprep.subr.mxu0 0.0
    %359 = vmatpush1.msra.mxu0 0.0
    %360 = vmatprep.subr.mxu0 0.0
    %361 = vmatpush1.msra.mxu0 0.0
    %362 = vmatprep.subr.mxu0 0.0
    %363 = vmatpush1.msra.mxu0 0.0
    %364 = vmatprep.mubr.f32.mxu0 0.0
    %365 = vmatmul.mubr.f32.gmra.mrb[0].mxu0 %v75
    %v366 = vpop.f32.mrb[0].mxu0
    %v367 = vadd.f32 %v208, %v366
    %v368 = vpop.f32.mrb[0].mxu0
    %369 = vmatprep.mubr.f32.mxu0 0.0
    %370 = vmatmul.mubr.f32.gmra.mrb[0].mxu0 %v76
    %v371 = vpop.f32.mrb[0].mxu0
    %v372 = vadd.f32 %v214, %v371
    %v373 = vpop.f32.mrb[0].mxu0
    %374 = vmatprep.mubr.f32.mxu0 0.0
    %375 = vmatmul.mubr.f32.gmra.mrb[0].mxu0 %v77
    %v376 = vpop.f32.mrb[0].mxu0
    %v377 = vadd.f32 %v220, %v376
    %v378 = vpop.f32.mrb[0].mxu0
    %379 = vmatprep.mubr.f32.mxu0 0.0
    %380 = vmatmul.mubr.f32.gmra.mrb[0].mxu0 %v78
    %v381 = vpop.f32.mrb[0].mxu0
    %v382 = vadd.f32 %v226, %v381
    %v383 = vpop.f32.mrb[0].mxu0
    %384 = vmatprep.mubr.f32.mxu0 0.0
    %385 = vmatmul.mubr.f32.gmra.mrb[0].mxu0 %v79
    %v386 = vpop.f32.mrb[0].mxu0
    %v387 = vadd.f32 %v232, %v386
    %v388 = vpop.f32.mrb[0].mxu0
    %389 = vmatprep.mubr.f32.mxu0 0.0
    %390 = vmatmul.mubr.f32.gmra.mrb[0].mxu0 %v80
    %v391 = vpop.f32.mrb[0].mxu0
    %v392 = vadd.f32 %v238, %v391
    %v393 = vpop.f32.mrb[0].mxu0
    %394 = vmatprep.mubr.f32.mxu0 0.0
    %395 = vmatmul.mubr.f32.gmra.mrb[0].mxu0 %v81
    %v396 = vpop.f32.mrb[0].mxu0
    %v397 = vadd.f32 %v244, %v396
    %v398 = vpop.f32.mrb[0].mxu0
    %399 = vmatprep.mubr.f32.mxu0 0.0
    %400 = vmatmul.mubr.f32.gmra.mrb[0].mxu0 %v82
    %v401 = vpop.f32.mrb[0].mxu0
    %v402 = vadd.f32 %v250, %v401
    %v403 = vpop.f32.mrb[0].mxu0
    %404 = vmatprep.mubr.f32.mxu0 0.0
    %405 = vmatmul.mubr.f32.gmra.mrb[0].mxu0 %v83
    %v406 = vpop.f32.mrb[0].mxu0
    %v407 = vadd.f32 %v256, %v406
    %v408 = vpop.f32.mrb[0].mxu0
    %409 = vmatprep.mubr.f32.mxu0 0.0
    %410 = vmatmul.mubr.f32.gmra.mrb[0].mxu0 %v84
    %v411 = vpop.f32.mrb[0].mxu0
    %v412 = vadd.f32 %v262, %v411
    %v413 = vpop.f32.mrb[0].mxu0
    %414 = vmatprep.mubr.f32.mxu0 0.0
    %415 = vmatmul.mubr.f32.gmra.mrb[0].mxu0 %v85
    %v416 = vpop.f32.mrb[0].mxu0
    %v417 = vadd.f32 %v268, %v416
    %v418 = vpop.f32.mrb[0].mxu0
    %419 = vmatprep.mubr.f32.mxu0 0.0
    %420 = vmatmul.mubr.f32.gmra.mrb[0].mxu0 %v86
    %v421 = vpop.f32.mrb[0].mxu0
    %v422 = vadd.f32 %v274, %v421
    %v423 = vpop.f32.mrb[0].mxu0
    %424 = vmatprep.mubr.f32.mxu0 0.0
    %425 = vmatmul.mubr.f32.gmra.mrb[0].mxu0 %v87
    %v426 = vpop.f32.mrb[0].mxu0
    %v427 = vadd.f32 %v280, %v426
    %v428 = vpop.f32.mrb[0].mxu0
    %429 = vmatprep.mubr.f32.mxu0 0.0
    %430 = vmatmul.mubr.f32.gmra.mrb[0].mxu0 %v88
    %v431 = vpop.f32.mrb[0].mxu0
    %v432 = vadd.f32 %v286, %v431
    %v433 = vpop.f32.mrb[0].mxu0
    %434 = vmatprep.mubr.f32.mxu0 0.0
    %435 = vmatmul.mubr.f32.gmra.mrb[0].mxu0 %v89
    %v436 = vpop.f32.mrb[0].mxu0
    %v437 = vadd.f32 %v292, %v436
    %v438 = vpop.f32.mrb[0].mxu0
    %439 = vmatprep.mubr.f32.mxu0 0.0
    %440 = vmatmul.mubr.f32.gmra.mrb[0].mxu0 %v90
    %v441 = vpop.f32.mrb[0].mxu0
    %v442 = vadd.f32 %v298, %v441
    %v443 = vpop.f32.mrb[0].mxu0
    %444 = vdwg.mxu0
    %v445 = vld [vmem:[%s3] sm:$0x1]
    %v447 = vlaneseq
    %v448 = vshrl.u32 %v447, 7
    %v449 = vsub.s32 0, %v448
    %v450 = vrot.slane %v445, %v449
    %v452 = vadd.f32 %v367, %v450
    %v453 = vadd.f32 %v372, %v450
    %v454 = vadd.f32 %v377, %v450
    %v455 = vadd.f32 %v382, %v450
    %v456 = vadd.f32 %v387, %v450
    %v457 = vadd.f32 %v392, %v450
    %v458 = vadd.f32 %v397, %v450
    %v459 = vadd.f32 %v402, %v450
    %v460 = vadd.f32 %v407, %v450
    %v461 = vadd.f32 %v412, %v450
    %v462 = vadd.f32 %v417, %v450
    %v463 = vadd.f32 %v422, %v450
    %v464 = vadd.f32 %v427, %v450
    %v465 = vadd.f32 %v432, %v450
    %v466 = vadd.f32 %v437, %v450
    %v467 = vadd.f32 %v442, %v450
    %v468 = vmax.f32 %v452, 0.0
    %v469 = vmax.f32 %v453, 0.0
    %v470 = vmax.f32 %v454, 0.0
    %v471 = vmax.f32 %v455, 0.0
    %v472 = vmax.f32 %v456, 0.0
    %v473 = vmax.f32 %v457, 0.0
    %v474 = vmax.f32 %v458, 0.0
    %v475 = vmax.f32 %v459, 0.0
    %v476 = vmax.f32 %v460, 0.0
    %v477 = vmax.f32 %v461, 0.0
    %v478 = vmax.f32 %v462, 0.0
    %v479 = vmax.f32 %v463, 0.0
    %v480 = vmax.f32 %v464, 0.0
    %v481 = vmax.f32 %v465, 0.0
    %v482 = vmax.f32 %v466, 0.0
    %v483 = vmax.f32 %v467, 0.0
    %s484 = scalar_lea.vmem [#allocation7], 256
    %v485 = vld [vmem:[%s484] sm:$0xff]
    %v486 = vld [vmem:[%s484 + $0x8] sm:$0xff]
    %v487 = vld [vmem:[%s484 + $0x10] sm:$0xff]
    %v488 = vld [vmem:[%s484 + $0x18] sm:$0xff]
    %v489 = vld [vmem:[%s484 + $0x20] sm:$0xff]
    %v490 = vld [vmem:[%s484 + $0x28] sm:$0xff]
    %v491 = vld [vmem:[%s484 + $0x30] sm:$0xff]
    %v492 = vld [vmem:[%s484 + $0x38] sm:$0xff]
    %v493 = vld [vmem:[%s484 + $0x40] sm:$0xff]
    %v494 = vld [vmem:[%s484 + $0x48] sm:$0xff]
    %v495 = vld [vmem:[%s484 + $0x50] sm:$0xff]
    %v496 = vld [vmem:[%s484 + $0x58] sm:$0xff]
    %v497 = vld [vmem:[%s484 + $0x60] sm:$0xff]
    %v498 = vld [vmem:[%s484 + $0x68] sm:$0xff]
    %v499 = vld [vmem:[%s484 + $0x70] sm:$0xff]
    %v500 = vld [vmem:[%s484 + $0x78] sm:$0xff]
    %v501 = vld [vmem:[%s484 + $0x80] sm:$0xff]
    %v502 = vld [vmem:[%s484 + $0x88] sm:$0xff]
    %v503 = vld [vmem:[%s484 + $0x90] sm:$0xff]
    %v504 = vld [vmem:[%s484 + $0x98] sm:$0xff]
    %v505 = vld [vmem:[%s484 + $0xa0] sm:$0xff]
    %v506 = vld [vmem:[%s484 + $0xa8] sm:$0xff]
    %v507 = vld [vmem:[%s484 + $0xb0] sm:$0xff]
    %v508 = vld [vmem:[%s484 + $0xb8] sm:$0xff]
    %v509 = vld [vmem:[%s484 + $0xc0] sm:$0xff]
    %v510 = vld [vmem:[%s484 + $0xc8] sm:$0xff]
    %v511 = vld [vmem:[%s484 + $0xd0] sm:$0xff]
    %v512 = vld [vmem:[%s484 + $0xd8] sm:$0xff]
    %v513 = vld [vmem:[%s484 + $0xe0] sm:$0xff]
    %v514 = vld [vmem:[%s484 + $0xe8] sm:$0xff]
    %v515 = vld [vmem:[%s484 + $0xf0] sm:$0xff]
    %v516 = vld [vmem:[%s484 + $0xf8] sm:$0xff]
    %517 = vmatprep.subr.mxu0 %v486
    %518 = vmatpush1.msra.mxu0 %v485
    %519 = vmatprep.subr.mxu0 %v488
    %520 = vmatpush1.msra.mxu0 %v487
    %521 = vmatprep.subr.mxu0 %v490
    %522 = vmatpush1.msra.mxu0 %v489
    %523 = vmatprep.subr.mxu0 %v492
    %524 = vmatpush1.msra.mxu0 %v491
    %525 = vmatprep.subr.mxu0 %v494
    %526 = vmatpush1.msra.mxu0 %v493
    %527 = vmatprep.subr.mxu0 %v496
    %528 = vmatpush1.msra.mxu0 %v495
    %529 = vmatprep.subr.mxu0 %v498
    %530 = vmatpush1.msra.mxu0 %v497
    %531 = vmatprep.subr.mxu0 %v500
    %532 = vmatpush1.msra.mxu0 %v499
    %533 = vmatprep.subr.mxu0 %v502
    %534 = vmatpush1.msra.mxu0 %v501
    %535 = vmatprep.subr.mxu0 %v504
    %536 = vmatpush1.msra.mxu0 %v503
    %537 = vmatprep.subr.mxu0 %v506
    %538 = vmatpush1.msra.mxu0 %v505
    %539 = vmatprep.subr.mxu0 %v508
    %540 = vmatpush1.msra.mxu0 %v507
    %541 = vmatprep.subr.mxu0 %v510
    %542 = vmatpush1.msra.mxu0 %v509
    %543 = vmatprep.subr.mxu0 %v512
    %544 = vmatpush1.msra.mxu0 %v511
    %545 = vmatprep.subr.mxu0 %v514
    %546 = vmatpush1.msra.mxu0 %v513
    %547 = vmatprep.subr.mxu0 %v516
    %548 = vmatpush1.msra.mxu0 %v515
    %549 = vmatprep.subr.mxu0 0.0
    %550 = vmatpush1.msra.mxu0 0.0
    %551 = vmatprep.subr.mxu0 0.0
    %552 = vmatpush1.msra.mxu0 0.0
    %553 = vmatprep.subr.mxu0 0.0
    %554 = vmatpush1.msra.mxu0 0.0
    %555 = vmatprep.subr.mxu0 0.0
    %556 = vmatpush1.msra.mxu0 0.0
    %557 = vmatprep.subr.mxu0 0.0
    %558 = vmatpush1.msra.mxu0 0.0
    %559 = vmatprep.subr.mxu0 0.0
    %560 = vmatpush1.msra.mxu0 0.0
    %561 = vmatprep.subr.mxu0 0.0
    %562 = vmatpush1.msra.mxu0 0.0
    %563 = vmatprep.subr.mxu0 0.0
    %564 = vmatpush1.msra.mxu0 0.0
    %565 = vmatprep.subr.mxu0 0.0
    %566 = vmatpush1.msra.mxu0 0.0
    %567 = vmatprep.subr.mxu0 0.0
    %568 = vmatpush1.msra.mxu0 0.0
    %569 = vmatprep.subr.mxu0 0.0
    %570 = vmatpush1.msra.mxu0 0.0
    %571 = vmatprep.subr.mxu0 0.0
    %572 = vmatpush1.msra.mxu0 0.0
    %573 = vmatprep.subr.mxu0 0.0
    %574 = vmatpush1.msra.mxu0 0.0
    %575 = vmatprep.subr.mxu0 0.0
    %576 = vmatpush1.msra.mxu0 0.0
    %577 = vmatprep.subr.mxu0 0.0
    %578 = vmatpush1.msra.mxu0 0.0
    %579 = vmatprep.subr.mxu0 0.0
    %580 = vmatpush1.msra.mxu0 0.0
    %581 = vmatprep.mubr.f32.mxu0 0.0
    %582 = vmatmul.mubr.f32.gmra.mrb[0].mxu0 %v468
    %v583 = vpop.f32.mrb[0].mxu0
    %v584 = vadd.f32 0.0, %v583
    %v585 = vpop.f32.mrb[0].mxu0
    %v586 = vadd.f32 0.0, %v585
    %587 = vmatprep.mubr.f32.mxu0 0.0
    %588 = vmatmul.mubr.f32.gmra.mrb[0].mxu0 %v469
    %v589 = vpop.f32.mrb[0].mxu0
    %v590 = vadd.f32 0.0, %v589
    %v591 = vpop.f32.mrb[0].mxu0
    %v592 = vadd.f32 0.0, %v591
    %593 = vmatprep.mubr.f32.mxu0 0.0
    %594 = vmatmul.mubr.f32.gmra.mrb[0].mxu0 %v470
    %v595 = vpop.f32.mrb[0].mxu0
    %v596 = vadd.f32 0.0, %v595
    %v597 = vpop.f32.mrb[0].mxu0
    %v598 = vadd.f32 0.0, %v597
    %599 = vmatprep.mubr.f32.mxu0 0.0
    %600 = vmatmul.mubr.f32.gmra.mrb[0].mxu0 %v471
    %v601 = vpop.f32.mrb[0].mxu0
    %v602 = vadd.f32 0.0, %v601
    %v603 = vpop.f32.mrb[0].mxu0
    %v604 = vadd.f32 0.0, %v603
    %605 = vmatprep.mubr.f32.mxu0 0.0
    %606 = vmatmul.mubr.f32.gmra.mrb[0].mxu0 %v472
    %v607 = vpop.f32.mrb[0].mxu0
    %v608 = vadd.f32 0.0, %v607
    %v609 = vpop.f32.mrb[0].mxu0
    %v610 = vadd.f32 0.0, %v609
    %611 = vmatprep.mubr.f32.mxu0 0.0
    %612 = vmatmul.mubr.f32.gmra.mrb[0].mxu0 %v473
    %v613 = vpop.f32.mrb[0].mxu0
    %v614 = vadd.f32 0.0, %v613
    %v615 = vpop.f32.mrb[0].mxu0
    %v616 = vadd.f32 0.0, %v615
    %617 = vmatprep.mubr.f32.mxu0 0.0
    %618 = vmatmul.mubr.f32.gmra.mrb[0].mxu0 %v474
    %v619 = vpop.f32.mrb[0].mxu0
    %v620 = vadd.f32 0.0, %v619
    %v621 = vpop.f32.mrb[0].mxu0
    %v622 = vadd.f32 0.0, %v621
    %623 = vmatprep.mubr.f32.mxu0 0.0
    %624 = vmatmul.mubr.f32.gmra.mrb[0].mxu0 %v475
    %v625 = vpop.f32.mrb[0].mxu0
    %v626 = vadd.f32 0.0, %v625
    %v627 = vpop.f32.mrb[0].mxu0
    %v628 = vadd.f32 0.0, %v627
    %629 = vmatprep.mubr.f32.mxu0 0.0
    %630 = vmatmul.mubr.f32.gmra.mrb[0].mxu0 %v476
    %v631 = vpop.f32.mrb[0].mxu0
    %v632 = vadd.f32 0.0, %v631
    %v633 = vpop.f32.mrb[0].mxu0
    %v634 = vadd.f32 0.0, %v633
    %635 = vmatprep.mubr.f32.mxu0 0.0
    %636 = vmatmul.mubr.f32.gmra.mrb[0].mxu0 %v477
    %v637 = vpop.f32.mrb[0].mxu0
    %v638 = vadd.f32 0.0, %v637
    %v639 = vpop.f32.mrb[0].mxu0
    %v640 = vadd.f32 0.0, %v639
    %641 = vmatprep.mubr.f32.mxu0 0.0
    %642 = vmatmul.mubr.f32.gmra.mrb[0].mxu0 %v478
    %v643 = vpop.f32.mrb[0].mxu0
    %v644 = vadd.f32 0.0, %v643
    %v645 = vpop.f32.mrb[0].mxu0
    %v646 = vadd.f32 0.0, %v645
    %647 = vmatprep.mubr.f32.mxu0 0.0
    %648 = vmatmul.mubr.f32.gmra.mrb[0].mxu0 %v479
    %v649 = vpop.f32.mrb[0].mxu0
    %v650 = vadd.f32 0.0, %v649
    %v651 = vpop.f32.mrb[0].mxu0
    %v652 = vadd.f32 0.0, %v651
    %653 = vmatprep.mubr.f32.mxu0 0.0
    %654 = vmatmul.mubr.f32.gmra.mrb[0].mxu0 %v480
    %v655 = vpop.f32.mrb[0].mxu0
    %v656 = vadd.f32 0.0, %v655
    %v657 = vpop.f32.mrb[0].mxu0
    %v658 = vadd.f32 0.0, %v657
    %659 = vmatprep.mubr.f32.mxu0 0.0
    %660 = vmatmul.mubr.f32.gmra.mrb[0].mxu0 %v481
    %v661 = vpop.f32.mrb[0].mxu0
    %v662 = vadd.f32 0.0, %v661
    %v663 = vpop.f32.mrb[0].mxu0
    %v664 = vadd.f32 0.0, %v663
    %665 = vmatprep.mubr.f32.mxu0 0.0
    %666 = vmatmul.mubr.f32.gmra.mrb[0].mxu0 %v482
    %v667 = vpop.f32.mrb[0].mxu0
    %v668 = vadd.f32 0.0, %v667
    %v669 = vpop.f32.mrb[0].mxu0
    %v670 = vadd.f32 0.0, %v669
    %671 = vmatprep.mubr.f32.mxu0 0.0
    %672 = vmatmul.mubr.f32.gmra.mrb[0].mxu0 %v483
    %v673 = vpop.f32.mrb[0].mxu0
    %v674 = vadd.f32 0.0, %v673
    %v675 = vpop.f32.mrb[0].mxu0
    %v676 = vadd.f32 0.0, %v675
    %677 = vdwg.mxu0
    %678 = vmatprep.subr.mxu0 0.0
    %679 = vmatpush1.msra.mxu0 %v584
    %680 = vmatprep.subr.mxu0 0.0
    %681 = vmatpush1.msra.mxu0 %v590
    %682 = vmatprep.subr.mxu0 0.0
    %683 = vmatpush1.msra.mxu0 %v596
    %684 = vmatprep.subr.mxu0 0.0
    %685 = vmatpush1.msra.mxu0 %v602
    %686 = vmatprep.subr.mxu0 0.0
    %687 = vmatpush1.msra.mxu0 %v608
    %688 = vmatprep.subr.mxu0 0.0
    %689 = vmatpush1.msra.mxu0 %v614
    %690 = vmatprep.subr.mxu0 0.0
    %691 = vmatpush1.msra.mxu0 %v620
    %692 = vmatprep.subr.mxu0 0.0
    %693 = vmatpush1.msra.mxu0 %v626
    %694 = vmatprep.subr.mxu0 0.0
    %695 = vmatpush1.msra.mxu0 %v632
    %696 = vmatprep.subr.mxu0 0.0
    %697 = vmatpush1.msra.mxu0 %v638
    %698 = vmatprep.subr.mxu0 0.0
    %699 = vmatpush1.msra.mxu0 %v644
    %700 = vmatprep.subr.mxu0 0.0
    %701 = vmatpush1.msra.mxu0 %v650
    %702 = vmatprep.subr.mxu0 0.0
    %703 = vmatpush1.msra.mxu0 %v656
    %704 = vmatprep.subr.mxu0 0.0
    %705 = vmatpush1.msra.mxu0 %v662
    %706 = vmatprep.subr.mxu0 0.0
    %707 = vmatpush1.msra.mxu0 %v668
    %708 = vmatprep.subr.mxu0 0.0
    %709 = vmatpush1.msra.mxu0 %v674
    %710 = vmatprep.subr.mxu0 0.0
    %711 = vmatpush1.msra.mxu0 0.0
    %712 = vmatprep.subr.mxu0 0.0
    %713 = vmatpush1.msra.mxu0 0.0
    %714 = vmatprep.subr.mxu0 0.0
    %715 = vmatpush1.msra.mxu0 0.0
    %716 = vmatprep.subr.mxu0 0.0
    %717 = vmatpush1.msra.mxu0 0.0
    %718 = vmatprep.subr.mxu0 0.0
    %719 = vmatpush1.msra.mxu0 0.0
    %720 = vmatprep.subr.mxu0 0.0
    %721 = vmatpush1.msra.mxu0 0.0
    %722 = vmatprep.subr.mxu0 0.0
    %723 = vmatpush1.msra.mxu0 0.0
    %724 = vmatprep.subr.mxu0 0.0
    %725 = vmatpush1.msra.mxu0 0.0
    %726 = vmatprep.subr.mxu0 0.0
    %727 = vmatpush1.msra.mxu0 0.0
    %728 = vmatprep.subr.mxu0 0.0
    %729 = vmatpush1.msra.mxu0 0.0
    %730 = vmatprep.subr.mxu0 0.0
    %731 = vmatpush1.msra.mxu0 0.0
    %732 = vmatprep.subr.mxu0 0.0
    %733 = vmatpush1.msra.mxu0 0.0
    %734 = vmatprep.subr.mxu0 0.0
    %735 = vmatpush1.msra.mxu0 0.0
    %736 = vmatprep.subr.mxu0 0.0
    %737 = vmatpush1.msra.mxu0 0.0
    %738 = vmatprep.subr.mxu0 0.0
    %739 = vmatpush1.msra.mxu0 0.0
    %740 = vmatprep.subr.mxu0 0.0
    %741 = vmatpush1.msra.mxu0 0.0
    %742 = vmatprep.mubr.f32.mxu0 0.0
    %743 = vmatmul.mubr.f32.gmra.mrb[0].mxu0 %v75
    %v744 = vpop.f32.mrb[0].mxu0
    %v745 = vadd.f32 %v586, %v744
    %v746 = vpop.f32.mrb[0].mxu0
    %747 = vmatprep.mubr.f32.mxu0 0.0
    %748 = vmatmul.mubr.f32.gmra.mrb[0].mxu0 %v76
    %v749 = vpop.f32.mrb[0].mxu0
    %v750 = vadd.f32 %v592, %v749
    %v751 = vpop.f32.mrb[0].mxu0
    %752 = vmatprep.mubr.f32.mxu0 0.0
    %753 = vmatmul.mubr.f32.gmra.mrb[0].mxu0 %v77
    %v754 = vpop.f32.mrb[0].mxu0
    %v755 = vadd.f32 %v598, %v754
    %v756 = vpop.f32.mrb[0].mxu0
    %757 = vmatprep.mubr.f32.mxu0 0.0
    %758 = vmatmul.mubr.f32.gmra.mrb[0].mxu0 %v78
    %v759 = vpop.f32.mrb[0].mxu0
    %v760 = vadd.f32 %v604, %v759
    %v761 = vpop.f32.mrb[0].mxu0
    %762 = vmatprep.mubr.f32.mxu0 0.0
    %763 = vmatmul.mubr.f32.gmra.mrb[0].mxu0 %v79
    %v764 = vpop.f32.mrb[0].mxu0
    %v765 = vadd.f32 %v610, %v764
    %v766 = vpop.f32.mrb[0].mxu0
    %767 = vmatprep.mubr.f32.mxu0 0.0
    %768 = vmatmul.mubr.f32.gmra.mrb[0].mxu0 %v80
    %v769 = vpop.f32.mrb[0].mxu0
    %v770 = vadd.f32 %v616, %v769
    %v771 = vpop.f32.mrb[0].mxu0
    %772 = vmatprep.mubr.f32.mxu0 0.0
    %773 = vmatmul.mubr.f32.gmra.mrb[0].mxu0 %v81
    %v774 = vpop.f32.mrb[0].mxu0
    %v775 = vadd.f32 %v622, %v774
    %v776 = vpop.f32.mrb[0].mxu0
    %777 = vmatprep.mubr.f32.mxu0 0.0
    %778 = vmatmul.mubr.f32.gmra.mrb[0].mxu0 %v82
    %v779 = vpop.f32.mrb[0].mxu0
    %v780 = vadd.f32 %v628, %v779
    %v781 = vpop.f32.mrb[0].mxu0
    %782 = vmatprep.mubr.f32.mxu0 0.0
    %783 = vmatmul.mubr.f32.gmra.mrb[0].mxu0 %v83
    %v784 = vpop.f32.mrb[0].mxu0
    %v785 = vadd.f32 %v634, %v784
    %v786 = vpop.f32.mrb[0].mxu0
    %787 = vmatprep.mubr.f32.mxu0 0.0
    %788 = vmatmul.mubr.f32.gmra.mrb[0].mxu0 %v84
    %v789 = vpop.f32.mrb[0].mxu0
    %v790 = vadd.f32 %v640, %v789
    %v791 = vpop.f32.mrb[0].mxu0
    %792 = vmatprep.mubr.f32.mxu0 0.0
    %793 = vmatmul.mubr.f32.gmra.mrb[0].mxu0 %v85
    %v794 = vpop.f32.mrb[0].mxu0
    %v795 = vadd.f32 %v646, %v794
    %v796 = vpop.f32.mrb[0].mxu0
    %797 = vmatprep.mubr.f32.mxu0 0.0
    %798 = vmatmul.mubr.f32.gmra.mrb[0].mxu0 %v86
    %v799 = vpop.f32.mrb[0].mxu0
    %v800 = vadd.f32 %v652, %v799
    %v801 = vpop.f32.mrb[0].mxu0
    %802 = vmatprep.mubr.f32.mxu0 0.0
    %803 = vmatmul.mubr.f32.gmra.mrb[0].mxu0 %v87
    %v804 = vpop.f32.mrb[0].mxu0
    %v805 = vadd.f32 %v658, %v804
    %v806 = vpop.f32.mrb[0].mxu0
    %807 = vmatprep.mubr.f32.mxu0 0.0
    %808 = vmatmul.mubr.f32.gmra.mrb[0].mxu0 %v88
    %v809 = vpop.f32.mrb[0].mxu0
    %v810 = vadd.f32 %v664, %v809
    %v811 = vpop.f32.mrb[0].mxu0
    %812 = vmatprep.mubr.f32.mxu0 0.0
    %813 = vmatmul.mubr.f32.gmra.mrb[0].mxu0 %v89
    %v814 = vpop.f32.mrb[0].mxu0
    %v815 = vadd.f32 %v670, %v814
    %v816 = vpop.f32.mrb[0].mxu0
    %817 = vmatprep.mubr.f32.mxu0 0.0
    %818 = vmatmul.mubr.f32.gmra.mrb[0].mxu0 %v90
    %v819 = vpop.f32.mrb[0].mxu0
    %v820 = vadd.f32 %v676, %v819
    %v821 = vpop.f32.mrb[0].mxu0
    %822 = vdwg.mxu0
    %s823 = scalar_lea.vmem %s3, 1
    %v824 = vld [vmem:[%s823] sm:$0x1]
    %v826 = vlaneseq
    %v827 = vshrl.u32 %v826, 7
    %v828 = vsub.s32 0, %v827
    %v829 = vrot.slane %v824, %v828
    %v831 = vadd.f32 %v745, %v829
    %v832 = vadd.f32 %v750, %v829
    %v833 = vadd.f32 %v755, %v829
    %v834 = vadd.f32 %v760, %v829
    %v835 = vadd.f32 %v765, %v829
    %v836 = vadd.f32 %v770, %v829
    %v837 = vadd.f32 %v775, %v829
    %v838 = vadd.f32 %v780, %v829
    %v839 = vadd.f32 %v785, %v829
    %v840 = vadd.f32 %v790, %v829
    %v841 = vadd.f32 %v795, %v829
    %v842 = vadd.f32 %v800, %v829
    %v843 = vadd.f32 %v805, %v829
    %v844 = vadd.f32 %v810, %v829
    %v845 = vadd.f32 %v815, %v829
    %v846 = vadd.f32 %v820, %v829
    %v847 = vmax.f32 %v831, 0.0
    %v848 = vmax.f32 %v832, 0.0
    %v849 = vmax.f32 %v833, 0.0
    %v850 = vmax.f32 %v834, 0.0
    %v851 = vmax.f32 %v835, 0.0
    %v852 = vmax.f32 %v836, 0.0
    %v853 = vmax.f32 %v837, 0.0
    %v854 = vmax.f32 %v838, 0.0
    %v855 = vmax.f32 %v839, 0.0
    %v856 = vmax.f32 %v840, 0.0
    %v857 = vmax.f32 %v841, 0.0
    %v858 = vmax.f32 %v842, 0.0
    %v859 = vmax.f32 %v843, 0.0
    %v860 = vmax.f32 %v844, 0.0
    %v861 = vmax.f32 %v845, 0.0
    %v862 = vmax.f32 %v846, 0.0
    %s863 = scalar_lea.vmem [#allocation7], 512
    %v864 = vld [vmem:[%s863] sm:$0xff]
    %v865 = vld [vmem:[%s863 + $0x8] sm:$0xff]
    %v866 = vld [vmem:[%s863 + $0x10] sm:$0xff]
    %v867 = vld [vmem:[%s863 + $0x18] sm:$0xff]
    %v868 = vld [vmem:[%s863 + $0x20] sm:$0xff]
    %v869 = vld [vmem:[%s863 + $0x28] sm:$0xff]
    %v870 = vld [vmem:[%s863 + $0x30] sm:$0xff]
    %v871 = vld [vmem:[%s863 + $0x38] sm:$0xff]
    %v872 = vld [vmem:[%s863 + $0x40] sm:$0xff]
    %v873 = vld [vmem:[%s863 + $0x48] sm:$0xff]
    %v874 = vld [vmem:[%s863 + $0x50] sm:$0xff]
    %v875 = vld [vmem:[%s863 + $0x58] sm:$0xff]
    %v876 = vld [vmem:[%s863 + $0x60] sm:$0xff]
    %v877 = vld [vmem:[%s863 + $0x68] sm:$0xff]
    %v878 = vld [vmem:[%s863 + $0x70] sm:$0xff]
    %v879 = vld [vmem:[%s863 + $0x78] sm:$0xff]
    %v880 = vld [vmem:[%s863 + $0x80] sm:$0xff]
    %v881 = vld [vmem:[%s863 + $0x88] sm:$0xff]
    %v882 = vld [vmem:[%s863 + $0x90] sm:$0xff]
    %v883 = vld [vmem:[%s863 + $0x98] sm:$0xff]
    %v884 = vld [vmem:[%s863 + $0xa0] sm:$0xff]
    %v885 = vld [vmem:[%s863 + $0xa8] sm:$0xff]
    %v886 = vld [vmem:[%s863 + $0xb0] sm:$0xff]
    %v887 = vld [vmem:[%s863 + $0xb8] sm:$0xff]
    %v888 = vld [vmem:[%s863 + $0xc0] sm:$0xff]
    %v889 = vld [vmem:[%s863 + $0xc8] sm:$0xff]
    %v890 = vld [vmem:[%s863 + $0xd0] sm:$0xff]
    %v891 = vld [vmem:[%s863 + $0xd8] sm:$0xff]
    %v892 = vld [vmem:[%s863 + $0xe0] sm:$0xff]
    %v893 = vld [vmem:[%s863 + $0xe8] sm:$0xff]
    %v894 = vld [vmem:[%s863 + $0xf0] sm:$0xff]
    %v895 = vld [vmem:[%s863 + $0xf8] sm:$0xff]
    %896 = vmatprep.subr.mxu0 %v865
    %897 = vmatpush1.msra.mxu0 %v864
    %898 = vmatprep.subr.mxu0 %v867
    %899 = vmatpush1.msra.mxu0 %v866
    %900 = vmatprep.subr.mxu0 %v869
    %901 = vmatpush1.msra.mxu0 %v868
    %902 = vmatprep.subr.mxu0 %v871
    %903 = vmatpush1.msra.mxu0 %v870
    %904 = vmatprep.subr.mxu0 %v873
    %905 = vmatpush1.msra.mxu0 %v872
    %906 = vmatprep.subr.mxu0 %v875
    %907 = vmatpush1.msra.mxu0 %v874
    %908 = vmatprep.subr.mxu0 %v877
    %909 = vmatpush1.msra.mxu0 %v876
    %910 = vmatprep.subr.mxu0 %v879
    %911 = vmatpush1.msra.mxu0 %v878
    %912 = vmatprep.subr.mxu0 %v881
    %913 = vmatpush1.msra.mxu0 %v880
    %914 = vmatprep.subr.mxu0 %v883
    %915 = vmatpush1.msra.mxu0 %v882
    %916 = vmatprep.subr.mxu0 %v885
    %917 = vmatpush1.msra.mxu0 %v884
    %918 = vmatprep.subr.mxu0 %v887
    %919 = vmatpush1.msra.mxu0 %v886
    %920 = vmatprep.subr.mxu0 %v889
    %921 = vmatpush1.msra.mxu0 %v888
    %922 = vmatprep.subr.mxu0 %v891
    %923 = vmatpush1.msra.mxu0 %v890
    %924 = vmatprep.subr.mxu0 %v893
    %925 = vmatpush1.msra.mxu0 %v892
    %926 = vmatprep.subr.mxu0 %v895
    %927 = vmatpush1.msra.mxu0 %v894
    %928 = vmatprep.subr.mxu0 0.0
    %929 = vmatpush1.msra.mxu0 0.0
    %930 = vmatprep.subr.mxu0 0.0
    %931 = vmatpush1.msra.mxu0 0.0
    %932 = vmatprep.subr.mxu0 0.0
    %933 = vmatpush1.msra.mxu0 0.0
    %934 = vmatprep.subr.mxu0 0.0
    %935 = vmatpush1.msra.mxu0 0.0
    %936 = vmatprep.subr.mxu0 0.0
    %937 = vmatpush1.msra.mxu0 0.0
    %938 = vmatprep.subr.mxu0 0.0
    %939 = vmatpush1.msra.mxu0 0.0
    %940 = vmatprep.subr.mxu0 0.0
    %941 = vmatpush1.msra.mxu0 0.0
    %942 = vmatprep.subr.mxu0 0.0
    %943 = vmatpush1.msra.mxu0 0.0
    %944 = vmatprep.subr.mxu0 0.0
    %945 = vmatpush1.msra.mxu0 0.0
    %946 = vmatprep.subr.mxu0 0.0
    %947 = vmatpush1.msra.mxu0 0.0
    %948 = vmatprep.subr.mxu0 0.0
    %949 = vmatpush1.msra.mxu0 0.0
    %950 = vmatprep.subr.mxu0 0.0
    %951 = vmatpush1.msra.mxu0 0.0
    %952 = vmatprep.subr.mxu0 0.0
    %953 = vmatpush1.msra.mxu0 0.0
    %954 = vmatprep.subr.mxu0 0.0
    %955 = vmatpush1.msra.mxu0 0.0
    %956 = vmatprep.subr.mxu0 0.0
    %957 = vmatpush1.msra.mxu0 0.0
    %958 = vmatprep.subr.mxu0 0.0
    %959 = vmatpush1.msra.mxu0 0.0
    %960 = vmatprep.mubr.f32.mxu0 0.0
    %961 = vmatmul.mubr.f32.gmra.mrb[0].mxu0 %v847
    %v962 = vpop.f32.mrb[0].mxu0
    %v963 = vadd.f32 0.0, %v962
    %v964 = vpop.f32.mrb[0].mxu0
    %v965 = vadd.f32 0.0, %v964
    %966 = vmatprep.mubr.f32.mxu0 0.0
    %967 = vmatmul.mubr.f32.gmra.mrb[0].mxu0 %v848
    %v968 = vpop.f32.mrb[0].mxu0
    %v969 = vadd.f32 0.0, %v968
    %v970 = vpop.f32.mrb[0].mxu0
    %v971 = vadd.f32 0.0, %v970
    %972 = vmatprep.mubr.f32.mxu0 0.0
    %973 = vmatmul.mubr.f32.gmra.mrb[0].mxu0 %v849
    %v974 = vpop.f32.mrb[0].mxu0
    %v975 = vadd.f32 0.0, %v974
    %v976 = vpop.f32.mrb[0].mxu0
    %v977 = vadd.f32 0.0, %v976
    %978 = vmatprep.mubr.f32.mxu0 0.0
    %979 = vmatmul.mubr.f32.gmra.mrb[0].mxu0 %v850
    %v980 = vpop.f32.mrb[0].mxu0
    %v981 = vadd.f32 0.0, %v980
    %v982 = vpop.f32.mrb[0].mxu0
    %v983 = vadd.f32 0.0, %v982
    %984 = vmatprep.mubr.f32.mxu0 0.0
    %985 = vmatmul.mubr.f32.gmra.mrb[0].mxu0 %v851
    %v986 = vpop.f32.mrb[0].mxu0
    %v987 = vadd.f32 0.0, %v986
    %v988 = vpop.f32.mrb[0].mxu0
    %v989 = vadd.f32 0.0, %v988
    %990 = vmatprep.mubr.f32.mxu0 0.0
    %991 = vmatmul.mubr.f32.gmra.mrb[0].mxu0 %v852
    %v992 = vpop.f32.mrb[0].mxu0
    %v993 = vadd.f32 0.0, %v992
    %v994 = vpop.f32.mrb[0].mxu0
    %v995 = vadd.f32 0.0, %v994
    %996 = vmatprep.mubr.f32.mxu0 0.0
    %997 = vmatmul.mubr.f32.gmra.mrb[0].mxu0 %v853
    %v998 = vpop.f32.mrb[0].mxu0
    %v999 = vadd.f32 0.0, %v998
    %v1000 = vpop.f32.mrb[0].mxu0
    %v1001 = vadd.f32 0.0, %v1000
    %1002 = vmatprep.mubr.f32.mxu0 0.0
    %1003 = vmatmul.mubr.f32.gmra.mrb[0].mxu0 %v854
    %v1004 = vpop.f32.mrb[0].mxu0
    %v1005 = vadd.f32 0.0, %v1004
    %v1006 = vpop.f32.mrb[0].mxu0
    %v1007 = vadd.f32 0.0, %v1006
    %1008 = vmatprep.mubr.f32.mxu0 0.0
    %1009 = vmatmul.mubr.f32.gmra.mrb[0].mxu0 %v855
    %v1010 = vpop.f32.mrb[0].mxu0
    %v1011 = vadd.f32 0.0, %v1010
    %v1012 = vpop.f32.mrb[0].mxu0
    %v1013 = vadd.f32 0.0, %v1012
    %1014 = vmatprep.mubr.f32.mxu0 0.0
    %1015 = vmatmul.mubr.f32.gmra.mrb[0].mxu0 %v856
    %v1016 = vpop.f32.mrb[0].mxu0
    %v1017 = vadd.f32 0.0, %v1016
    %v1018 = vpop.f32.mrb[0].mxu0
    %v1019 = vadd.f32 0.0, %v1018
    %1020 = vmatprep.mubr.f32.mxu0 0.0
    %1021 = vmatmul.mubr.f32.gmra.mrb[0].mxu0 %v857
    %v1022 = vpop.f32.mrb[0].mxu0
    %v1023 = vadd.f32 0.0, %v1022
    %v1024 = vpop.f32.mrb[0].mxu0
    %v1025 = vadd.f32 0.0, %v1024
    %1026 = vmatprep.mubr.f32.mxu0 0.0
    %1027 = vmatmul.mubr.f32.gmra.mrb[0].mxu0 %v858
    %v1028 = vpop.f32.mrb[0].mxu0
    %v1029 = vadd.f32 0.0, %v1028
    %v1030 = vpop.f32.mrb[0].mxu0
    %v1031 = vadd.f32 0.0, %v1030
    %1032 = vmatprep.mubr.f32.mxu0 0.0
    %1033 = vmatmul.mubr.f32.gmra.mrb[0].mxu0 %v859
    %v1034 = vpop.f32.mrb[0].mxu0
    %v1035 = vadd.f32 0.0, %v1034
    %v1036 = vpop.f32.mrb[0].mxu0
    %v1037 = vadd.f32 0.0, %v1036
    %1038 = vmatprep.mubr.f32.mxu0 0.0
    %1039 = vmatmul.mubr.f32.gmra.mrb[0].mxu0 %v860
    %v1040 = vpop.f32.mrb[0].mxu0
    %v1041 = vadd.f32 0.0, %v1040
    %v1042 = vpop.f32.mrb[0].mxu0
    %v1043 = vadd.f32 0.0, %v1042
    %1044 = vmatprep.mubr.f32.mxu0 0.0
    %1045 = vmatmul.mubr.f32.gmra.mrb[0].mxu0 %v861
    %v1046 = vpop.f32.mrb[0].mxu0
    %v1047 = vadd.f32 0.0, %v1046
    %v1048 = vpop.f32.mrb[0].mxu0
    %v1049 = vadd.f32 0.0, %v1048
    %1050 = vmatprep.mubr.f32.mxu0 0.0
    %1051 = vmatmul.mubr.f32.gmra.mrb[0].mxu0 %v862
    %v1052 = vpop.f32.mrb[0].mxu0
    %v1053 = vadd.f32 0.0, %v1052
    %v1054 = vpop.f32.mrb[0].mxu0
    %v1055 = vadd.f32 0.0, %v1054
    %1056 = vdwg.mxu0
    %1057 = vmatprep.subr.mxu0 0.0
    %1058 = vmatpush1.msra.mxu0 %v963
    %1059 = vmatprep.subr.mxu0 0.0
    %1060 = vmatpush1.msra.mxu0 %v969
    %1061 = vmatprep.subr.mxu0 0.0
    %1062 = vmatpush1.msra.mxu0 %v975
    %1063 = vmatprep.subr.mxu0 0.0
    %1064 = vmatpush1.msra.mxu0 %v981
    %1065 = vmatprep.subr.mxu0 0.0
    %1066 = vmatpush1.msra.mxu0 %v987
    %1067 = vmatprep.subr.mxu0 0.0
    %1068 = vmatpush1.msra.mxu0 %v993
    %1069 = vmatprep.subr.mxu0 0.0
    %1070 = vmatpush1.msra.mxu0 %v999
    %1071 = vmatprep.subr.mxu0 0.0
    %1072 = vmatpush1.msra.mxu0 %v1005
    %1073 = vmatprep.subr.mxu0 0.0
    %1074 = vmatpush1.msra.mxu0 %v1011
    %1075 = vmatprep.subr.mxu0 0.0
    %1076 = vmatpush1.msra.mxu0 %v1017
    %1077 = vmatprep.subr.mxu0 0.0
    %1078 = vmatpush1.msra.mxu0 %v1023
    %1079 = vmatprep.subr.mxu0 0.0
    %1080 = vmatpush1.msra.mxu0 %v1029
    %1081 = vmatprep.subr.mxu0 0.0
    %1082 = vmatpush1.msra.mxu0 %v1035
    %1083 = vmatprep.subr.mxu0 0.0
    %1084 = vmatpush1.msra.mxu0 %v1041
    %1085 = vmatprep.subr.mxu0 0.0
    %1086 = vmatpush1.msra.mxu0 %v1047
    %1087 = vmatprep.subr.mxu0 0.0
    %1088 = vmatpush1.msra.mxu0 %v1053
    %1089 = vmatprep.subr.mxu0 0.0
    %1090 = vmatpush1.msra.mxu0 0.0
    %1091 = vmatprep.subr.mxu0 0.0
    %1092 = vmatpush1.msra.mxu0 0.0
    %1093 = vmatprep.subr.mxu0 0.0
    %1094 = vmatpush1.msra.mxu0 0.0
    %1095 = vmatprep.subr.mxu0 0.0
    %1096 = vmatpush1.msra.mxu0 0.0
    %1097 = vmatprep.subr.mxu0 0.0
    %1098 = vmatpush1.msra.mxu0 0.0
    %1099 = vmatprep.subr.mxu0 0.0
    %1100 = vmatpush1.msra.mxu0 0.0
    %1101 = vmatprep.subr.mxu0 0.0
    %1102 = vmatpush1.msra.mxu0 0.0
    %1103 = vmatprep.subr.mxu0 0.0
    %1104 = vmatpush1.msra.mxu0 0.0
    %1105 = vmatprep.subr.mxu0 0.0
    %1106 = vmatpush1.msra.mxu0 0.0
    %1107 = vmatprep.subr.mxu0 0.0
    %1108 = vmatpush1.msra.mxu0 0.0
    %1109 = vmatprep.subr.mxu0 0.0
    %1110 = vmatpush1.msra.mxu0 0.0
    %1111 = vmatprep.subr.mxu0 0.0
    %1112 = vmatpush1.msra.mxu0 0.0
    %1113 = vmatprep.subr.mxu0 0.0
    %1114 = vmatpush1.msra.mxu0 0.0
    %1115 = vmatprep.subr.mxu0 0.0
    %1116 = vmatpush1.msra.mxu0 0.0
    %1117 = vmatprep.subr.mxu0 0.0
    %1118 = vmatpush1.msra.mxu0 0.0
    %1119 = vmatprep.subr.mxu0 0.0
    %1120 = vmatpush1.msra.mxu0 0.0
    %1121 = vmatprep.mubr.f32.mxu0 0.0
    %1122 = vmatmul.mubr.f32.gmra.mrb[0].mxu0 %v75
    %v1123 = vpop.f32.mrb[0].mxu0
    %v1124 = vadd.f32 %v965, %v1123
    %v1125 = vpop.f32.mrb[0].mxu0
    %1126 = vmatprep.mubr.f32.mxu0 0.0
    %1127 = vmatmul.mubr.f32.gmra.mrb[0].mxu0 %v76
    %v1128 = vpop.f32.mrb[0].mxu0
    %v1129 = vadd.f32 %v971, %v1128
    %v1130 = vpop.f32.mrb[0].mxu0
    %1131 = vmatprep.mubr.f32.mxu0 0.0
    %1132 = vmatmul.mubr.f32.gmra.mrb[0].mxu0 %v77
    %v1133 = vpop.f32.mrb[0].mxu0
    %v1134 = vadd.f32 %v977, %v1133
    %v1135 = vpop.f32.mrb[0].mxu0
    %1136 = vmatprep.mubr.f32.mxu0 0.0
    %1137 = vmatmul.mubr.f32.gmra.mrb[0].mxu0 %v78
    %v1138 = vpop.f32.mrb[0].mxu0
    %v1139 = vadd.f32 %v983, %v1138
    %v1140 = vpop.f32.mrb[0].mxu0
    %1141 = vmatprep.mubr.f32.mxu0 0.0
    %1142 = vmatmul.mubr.f32.gmra.mrb[0].mxu0 %v79
    %v1143 = vpop.f32.mrb[0].mxu0
    %v1144 = vadd.f32 %v989, %v1143
    %v1145 = vpop.f32.mrb[0].mxu0
    %1146 = vmatprep.mubr.f32.mxu0 0.0
    %1147 = vmatmul.mubr.f32.gmra.mrb[0].mxu0 %v80
    %v1148 = vpop.f32.mrb[0].mxu0
    %v1149 = vadd.f32 %v995, %v1148
    %v1150 = vpop.f32.mrb[0].mxu0
    %1151 = vmatprep.mubr.f32.mxu0 0.0
    %1152 = vmatmul.mubr.f32.gmra.mrb[0].mxu0 %v81
    %v1153 = vpop.f32.mrb[0].mxu0
    %v1154 = vadd.f32 %v1001, %v1153
    %v1155 = vpop.f32.mrb[0].mxu0
    %1156 = vmatprep.mubr.f32.mxu0 0.0
    %1157 = vmatmul.mubr.f32.gmra.mrb[0].mxu0 %v82
    %v1158 = vpop.f32.mrb[0].mxu0
    %v1159 = vadd.f32 %v1007, %v1158
    %v1160 = vpop.f32.mrb[0].mxu0
    %1161 = vmatprep.mubr.f32.mxu0 0.0
    %1162 = vmatmul.mubr.f32.gmra.mrb[0].mxu0 %v83
    %v1163 = vpop.f32.mrb[0].mxu0
    %v1164 = vadd.f32 %v1013, %v1163
    %v1165 = vpop.f32.mrb[0].mxu0
    %1166 = vmatprep.mubr.f32.mxu0 0.0
    %1167 = vmatmul.mubr.f32.gmra.mrb[0].mxu0 %v84
    %v1168 = vpop.f32.mrb[0].mxu0
    %v1169 = vadd.f32 %v1019, %v1168
    %v1170 = vpop.f32.mrb[0].mxu0
    %1171 = vmatprep.mubr.f32.mxu0 0.0
    %1172 = vmatmul.mubr.f32.gmra.mrb[0].mxu0 %v85
    %v1173 = vpop.f32.mrb[0].mxu0
    %v1174 = vadd.f32 %v1025, %v1173
    %v1175 = vpop.f32.mrb[0].mxu0
    %1176 = vmatprep.mubr.f32.mxu0 0.0
    %1177 = vmatmul.mubr.f32.gmra.mrb[0].mxu0 %v86
    %v1178 = vpop.f32.mrb[0].mxu0
    %v1179 = vadd.f32 %v1031, %v1178
    %v1180 = vpop.f32.mrb[0].mxu0
    %1181 = vmatprep.mubr.f32.mxu0 0.0
    %1182 = vmatmul.mubr.f32.gmra.mrb[0].mxu0 %v87
    %v1183 = vpop.f32.mrb[0].mxu0
    %v1184 = vadd.f32 %v1037, %v1183
    %v1185 = vpop.f32.mrb[0].mxu0
    %1186 = vmatprep.mubr.f32.mxu0 0.0
    %1187 = vmatmul.mubr.f32.gmra.mrb[0].mxu0 %v88
    %v1188 = vpop.f32.mrb[0].mxu0
    %v1189 = vadd.f32 %v1043, %v1188
    %v1190 = vpop.f32.mrb[0].mxu0
    %1191 = vmatprep.mubr.f32.mxu0 0.0
    %1192 = vmatmul.mubr.f32.gmra.mrb[0].mxu0 %v89
    %v1193 = vpop.f32.mrb[0].mxu0
    %v1194 = vadd.f32 %v1049, %v1193
    %v1195 = vpop.f32.mrb[0].mxu0
    %1196 = vmatprep.mubr.f32.mxu0 0.0
    %1197 = vmatmul.mubr.f32.gmra.mrb[0].mxu0 %v90
    %v1198 = vpop.f32.mrb[0].mxu0
    %v1199 = vadd.f32 %v1055, %v1198
    %v1200 = vpop.f32.mrb[0].mxu0
    %1201 = vdwg.mxu0
    %s1202 = scalar_lea.vmem %s3, 2
    %v1203 = vld [vmem:[%s1202] sm:$0x1]
    %v1205 = vlaneseq
    %v1206 = vshrl.u32 %v1205, 7
    %v1207 = vsub.s32 0, %v1206
    %v1208 = vrot.slane %v1203, %v1207
    %v1210 = vadd.f32 %v1124, %v1208
    %v1211 = vadd.f32 %v1129, %v1208
    %v1212 = vadd.f32 %v1134, %v1208
    %v1213 = vadd.f32 %v1139, %v1208
    %v1214 = vadd.f32 %v1144, %v1208
    %v1215 = vadd.f32 %v1149, %v1208
    %v1216 = vadd.f32 %v1154, %v1208
    %v1217 = vadd.f32 %v1159, %v1208
    %v1218 = vadd.f32 %v1164, %v1208
    %v1219 = vadd.f32 %v1169, %v1208
    %v1220 = vadd.f32 %v1174, %v1208
    %v1221 = vadd.f32 %v1179, %v1208
    %v1222 = vadd.f32 %v1184, %v1208
    %v1223 = vadd.f32 %v1189, %v1208
    %v1224 = vadd.f32 %v1194, %v1208
    %v1225 = vadd.f32 %v1199, %v1208
    %1226 = vst [vmem:[#allocation8] sm:$0xff] %v1210
    %1227 = vst [vmem:[#allocation8 + $0x8] sm:$0xff] %v1211
    %1228 = vst [vmem:[#allocation8 + $0x10] sm:$0xff] %v1212
    %1229 = vst [vmem:[#allocation8 + $0x18] sm:$0xff] %v1213
    %1230 = vst [vmem:[#allocation8 + $0x20] sm:$0xff] %v1214
    %1231 = vst [vmem:[#allocation8 + $0x28] sm:$0xff] %v1215
    %1232 = vst [vmem:[#allocation8 + $0x30] sm:$0xff] %v1216
    %1233 = vst [vmem:[#allocation8 + $0x38] sm:$0xff] %v1217
    %1234 = vst [vmem:[#allocation8 + $0x40] sm:$0xff] %v1218
    %1235 = vst [vmem:[#allocation8 + $0x48] sm:$0xff] %v1219
    %1236 = vst [vmem:[#allocation8 + $0x50] sm:$0xff] %v1220
    %1237 = vst [vmem:[#allocation8 + $0x58] sm:$0xff] %v1221
    %1238 = vst [vmem:[#allocation8 + $0x60] sm:$0xff] %v1222
    %1239 = vst [vmem:[#allocation8 + $0x68] sm:$0xff] %v1223
    %1240 = vst [vmem:[#allocation8 + $0x70] sm:$0xff] %v1224
    %1241 = vst [vmem:[#allocation8 + $0x78] sm:$0xff] %v1225
    // Predicated region
    $region30: #{tpu_custom_call.1} parent=1 // pred_check
      _
    $region31: #{tpu_custom_call.1} parent=1 // pred_check_branch
      %1243 = sbr.rel (0) target = $region33
    $region32: #{tpu_custom_call.1} parent=1 // pred_region
      %s1245 = ssub.s32 2048, 2048
      %1246 = vsyncadd [#allocation4], %s1245
      %s1247 = sshll.u32 [#allocation8], 4
      %s1248 = int_to_ptr.vmem [resolvable:$true] %s1247
      %1253 = dma.vmem_to_hbm [thread:$0]  %s1248, 2048, %s4, [#allocation4], 128, 128, 8
    $region33: #{tpu_custom_call.1} parent=1 // pred_fallthru
      _
    // Predicated region
    $region34: #{tpu_custom_call.1} parent=1 // pred_check
      _
    $region35: #{tpu_custom_call.1} parent=1 // pred_check_branch
      %1255 = sbr.rel (0) target = $region37
    $region36: #{tpu_custom_call.1} parent=1 // pred_region
      %1256 = dma.done [#allocation4], 2048
    $region37: #{tpu_custom_call.1} parent=1 // pred_fallthru
      _
    %1257 = vsyncpa [#allocation3], 1
    %1258 = vsyncpa [#allocation6], 1
    %1259 = vsyncpa [#allocation4], 1

</llo_original>
